<compile_context>
chip_gen: v7x
topology: tpu7x:2x2x1
jax: 0.10.0
libtpu: 0.0.40
codegen_flags: <defaults>
</compile_context>

<pallas_src>
import jax
import jax.numpy as jnp
from jax.experimental import pallas as pl
from jax.experimental.pallas import tpu as pltpu

NUM_POSSIBLE_SCORES = int(30.5 * 2 + 1)  # 62
MIN_SCORE, MAX_SCORE = -30.5, 30.5
S_PAD = 128                               # lane-dense padded score dimension


def _round_up(x, m):
    return ((x + m - 1) // m) * m


def _final_score_dist_kernel(v_ref, w1_ref, ws1_ref, tw_ref, aux_ref, out_ref):
    """One batch tile.

    v_ref   : (TB, P)        pooled features (batch-tiled)
    w1_ref  : (P, C)         fc1 weight, pooled-feature part (transposed), pinned
    ws1_ref : (P, C)         scale_fc1 weight (transposed), pinned
    tw_ref  : (2C+8, S_PAD)  rows 0..C-1 : t[c,s] = 0.05*score[s]*fc1_w[c,P] + fc1_b[c]
                             rows C..2C-1: fc2_w[c] replicated across lanes
                             row  2C     : fc2_b replicated across lanes
    aux_ref : (8, C)         row0: scale_fc1_b, row1: scale_fc2_w, row2[0]: scale_fc2_b
    out_ref : (TB, S_PAD)    scaled logits (padded, lane-dense)
    """
    C = w1_ref.shape[1]
    v = v_ref[...]                                                     # (TB, P) f32

    # ---- scale branch (tiny): softplus(scale_fc2(relu(scale_fc1(v)))) ----
    hs = jnp.maximum(
        jnp.dot(v, ws1_ref[...], preferred_element_type=jnp.float32) + aux_ref[0:1, :],
        0.0)                                                           # (TB, C)
    gamma = jnp.sum(hs * aux_ref[1:2, :], axis=-1, keepdims=True) + aux_ref[2:3, 0:1]  # (TB, 1)
    sp = jnp.where(gamma > 20.0, gamma,
                   jnp.log1p(jnp.exp(jnp.minimum(gamma, 20.0))))       # matches F.softplus

    # ---- main branch: fc2(relu(fc1(...))) with lane-dense accumulation over C ----
    a = jnp.dot(v, w1_ref[...], preferred_element_type=jnp.float32)    # (TB, C); fc1_b folded into tw

    # Accumulate over the C hidden channels with purely 2-D, lane-dense (TB, 128) ops:
    # per channel: relu(a[:, c] (lane-bcast) + t_row (sublane-bcast)) * fc2_w[c].
    # Static unroll (C is a small compile-time constant); live set stays ~2*(TB,128).
    acc = jnp.zeros(out_ref.shape, jnp.float32)                        # (TB, S_PAD)
    for c in range(C):
        t_row = tw_ref[c:c + 1, :]                                     # (1, S_PAD)
        w2_row = tw_ref[C + c:C + c + 1, :]                            # (1, S_PAD)
        acc = acc + jnp.maximum(a[:, c:c + 1] + t_row, 0.0) * w2_row   # (TB, S_PAD)

    b2_row = tw_ref[2 * C:2 * C + 1, :]                                # (1, S_PAD) fc2_b
    out_ref[...] = (acc + b2_row) * sp                                 # lane-dense store


def final_score_dist_head(v_pooled, params):
    """Pallas implementation of FinalScoreDistHead.forward (returns (B, 62))."""
    B, P = v_pooled.shape
    S = NUM_POSSIBLE_SCORES
    C = params["fc1_w"].shape[0]

    # --- pinned weights / packed small params (constant folding, done once in XLA) ---
    w1p = params["fc1_w"][:, :P].T.astype(jnp.float32)                 # (P, C)
    ws1 = params["scale_fc1_w"].T.astype(jnp.float32)                  # (P, C)

    scores = jnp.linspace(MIN_SCORE, MAX_SCORE, S, dtype=jnp.float32)  # unit step
    scores_pad = jnp.zeros((S_PAD,), jnp.float32).at[:S].set(scores)
    w1s = params["fc1_w"][:, P]                                        # (C,) fc1 score column
    t = w1s[:, None] * (scores_pad * 0.05)[None, :] + params["fc1_b"][:, None]   # (C, S_PAD)
    w2b = jnp.broadcast_to(params["fc2_w"][0][:, None], (C, S_PAD))               # (C, S_PAD)
    b2row = jnp.broadcast_to(params["fc2_b"].reshape(1, 1), (1, S_PAD))            # (1, S_PAD)
    tw = jnp.concatenate(
        [t, w2b, b2row, jnp.zeros((7, S_PAD), jnp.float32)], axis=0
    ).astype(jnp.float32)                                              # (2C+8, S_PAD)

    aux = jnp.zeros((8, C), jnp.float32)
    aux = aux.at[0, :].set(params["scale_fc1_b"])
    aux = aux.at[1, :].set(params["scale_fc2_w"][0])
    aux = aux.at[2, 0].set(params["scale_fc2_b"][0])

    # --- batch tiling: >=2 grid steps when possible (v7x 2 TCs), tile capped at 256 ---
    b8 = _round_up(max(B, 1), 8)
    TB = min(256, max(8, _round_up((b8 + 1) // 2, 8)))
    B_pad = _round_up(b8, TB)
    v_pad = jnp.zeros((B_pad, P), jnp.float32).at[:B, :].set(v_pooled.astype(jnp.float32))

    grid = (B_pad // TB,)
    out_full = pl.pallas_call(
        _final_score_dist_kernel,
        out_shape=jax.ShapeDtypeStruct((B_pad, S_PAD), jnp.float32),
        grid=grid,
        in_specs=[
            pl.BlockSpec((TB, P), lambda i: (i, 0)),            # batch-tiled activations
            pl.BlockSpec((P, C), lambda i: (0, 0)),             # fc1 pooled-part weight (pinned)
            pl.BlockSpec((P, C), lambda i: (0, 0)),             # scale_fc1 weight (pinned)
            pl.BlockSpec((2 * C + 8, S_PAD), lambda i: (0, 0)),  # t / fc2_w / fc2_b rows (pinned)
            pl.BlockSpec((8, C), lambda i: (0, 0)),              # scale-branch small params (pinned)
        ],
        out_specs=pl.BlockSpec((TB, S_PAD), lambda i: (i, 0)),
        compiler_params=pltpu.CompilerParams(
            dimension_semantics=("parallel",),                  # megacore / 2-TC split on v7x
            vmem_limit_bytes=32 * 1024 * 1024,                  # safe headroom on v5e/v6e/v7x
        ),
    )(v_pad, w1p, ws1, tw, aux)

    return out_full[:B, :S]


def reference(v_pooled, params):
    """Pure-JAX transliteration of the PyTorch forward (f32-exact dots for verification)."""
    hp = jax.lax.Precision.HIGHEST
    B, P = v_pooled.shape
    S = NUM_POSSIBLE_SCORES
    h1 = jnp.maximum(
        jnp.dot(v_pooled, params["scale_fc1_w"].T, precision=hp) + params["scale_fc1_b"], 0.0)
    gamma = jnp.dot(h1, params["scale_fc2_w"].T, precision=hp) + params["scale_fc2_b"]   # (B, 1)
    scores = jnp.linspace(MIN_SCORE, MAX_SCORE, S, dtype=jnp.float32)
    scaled_scores_feat = jnp.broadcast_to((scores * 0.05)[None, :, None], (B, S, 1))
    v_expanded = jnp.broadcast_to(v_pooled[:, None, :], (B, S, P))
    combined = jnp.concatenate([v_expanded, scaled_scores_feat], axis=2)                 # (B, S, P+1)
    h = jnp.maximum(
        jnp.einsum("bsp,cp->bsc", combined, params["fc1_w"], precision=hp) + params["fc1_b"], 0.0)
    unscaled = jnp.einsum("bsc,oc->bso", h, params["fc2_w"], precision=hp) + params["fc2_b"]
    scaled = unscaled * jax.nn.softplus(gamma)[:, :, None]
    return scaled[..., 0]                                                                # (B, S)


def init_params(key, pooled_features_dim, value_head_intermediate_channels):
    P, C = pooled_features_dim, value_head_intermediate_channels
    ks = jax.random.split(key, 8)
    return {
        "fc1_w": jax.random.normal(ks[0], (C, P + 1), jnp.float32) * 0.1,
        "fc1_b": jax.random.normal(ks[1], (C,), jnp.float32) * 0.01,
        "fc2_w": jax.random.normal(ks[2], (1, C), jnp.float32) * 0.1,
        "fc2_b": jax.random.normal(ks[3], (1,), jnp.float32) * 0.01,
        "scale_fc1_w": jax.random.normal(ks[4], (C, P), jnp.float32) * 0.1,
        "scale_fc1_b": jax.random.normal(ks[5], (C,), jnp.float32) * 0.01,
        "scale_fc2_w": jax.random.normal(ks[6], (1, C), jnp.float32) * 0.1,
        "scale_fc2_b": jax.random.normal(ks[7], (1,), jnp.float32) * 0.01,
    }


if __name__ == "__main__":
    P = 32                # pooled_features_dim
    C = 32                # value_head_intermediate_channels

    key = jax.random.PRNGKey(0)
    k_params, k_x1, k_x2 = jax.random.split(key, 3)
    params = init_params(k_params, P, C)

    # small-shape check (single grid step)
    B = 2
    v_pooled = jax.random.normal(k_x1, (B, P), jnp.float32)
    out = jax.block_until_ready(final_score_dist_head(v_pooled, params))
    ref = reference(v_pooled, params)
    assert out.shape == (B, NUM_POSSIBLE_SCORES), out.shape
    assert jnp.allclose(out, ref, atol=1e-4, rtol=1e-4), (
        f"max abs err = {jnp.max(jnp.abs(out - ref))}")

    # multi-block batch check (exercises grid >= 2 + padding path)
    B2 = 200
    v_pooled2 = jax.random.normal(k_x2, (B2, P), jnp.float32)
    out2 = jax.block_until_ready(final_score_dist_head(v_pooled2, params))
    ref2 = reference(v_pooled2, params)
    assert out2.shape == (B2, NUM_POSSIBLE_SCORES), out2.shape
    assert jnp.allclose(out2, ref2, atol=1e-4, rtol=1e-4), (
        f"max abs err = {jnp.max(jnp.abs(out2 - ref2))}")

    print("KERNEL_OK")
</pallas_src>

<mosaic_0001>
module attributes {stable_mosaic.version = 11 : i64} {
  func.func @_final_score_dist_kernel(%arg0: i32, %arg1: memref<8x32xf32, #tpu.memory_space<vmem>>, %arg2: memref<32x32xf32, #tpu.memory_space<vmem>>, %arg3: memref<32x32xf32, #tpu.memory_space<vmem>>, %arg4: memref<72x128xf32, #tpu.memory_space<vmem>>, %arg5: memref<8x32xf32, #tpu.memory_space<vmem>>, %arg6: memref<8x128xf32, #tpu.memory_space<vmem>>) attributes {dimension_semantics = [#tpu.dimension_semantics<parallel>], iteration_bounds = array<i64: 1>, scalar_prefetch = 0 : i64, scratch_operands = 0 : i64, tpu.core_type = #tpu.core_type<tc>, window_params = [{transform_indices = @transform_0, window_bounds = array<i64: 8, 32>}, {pipeline_mode = #tpu.pipeline_mode<synchronous>, transform_indices = @transform_1, window_bounds = array<i64: 32, 32>}, {pipeline_mode = #tpu.pipeline_mode<synchronous>, transform_indices = @transform_2, window_bounds = array<i64: 32, 32>}, {pipeline_mode = #tpu.pipeline_mode<synchronous>, transform_indices = @transform_3, window_bounds = array<i64: 72, 128>}, {pipeline_mode = #tpu.pipeline_mode<synchronous>, transform_indices = @transform_4, window_bounds = array<i64: 8, 32>}, {transform_indices = @transform_5, window_bounds = array<i64: 8, 128>}]} {
    %c0 = arith.constant 0 : index
    %c0_0 = arith.constant 0 : index
    %0 = vector.load %arg1[%c0, %c0_0] : memref<8x32xf32, #tpu.memory_space<vmem>>, vector<8x32xf32>
    %c0_1 = arith.constant 0 : index
    %c0_2 = arith.constant 0 : index
    %1 = vector.load %arg3[%c0_1, %c0_2] : memref<32x32xf32, #tpu.memory_space<vmem>>, vector<32x32xf32>
    %cst = arith.constant dense<0.000000e+00> : vector<8x32xf32>
    %2 = tpu.matmul %0, %1, %cst {dimension_numbers = #tpu.dot_dimension_numbers<[1], [0], [0], [1], [0, 0, 1, 1], [], []>} : vector<8x32xf32>, vector<32x32xf32>, vector<8x32xf32> -> vector<8x32xf32>
    %c0_3 = arith.constant 0 : index
    %c0_4 = arith.constant 0 : index
    %3 = vector.load %arg5[%c0_3, %c0_4] : memref<8x32xf32, #tpu.memory_space<vmem>>, vector<1x32xf32>
    %4 = vector.broadcast %3 : vector<1x32xf32> to vector<8x32xf32>
    %5 = arith.addf %2, %4 : vector<8x32xf32>
    %cst_5 = arith.constant 0.000000e+00 : f32
    %6 = vector.broadcast %cst_5 : f32 to vector<8x32xf32>
    %7 = arith.maximumf %5, %6 : vector<8x32xf32>
    %c1 = arith.constant 1 : index
    %c0_6 = arith.constant 0 : index
    %8 = vector.load %arg5[%c1, %c0_6] : memref<8x32xf32, #tpu.memory_space<vmem>>, vector<1x32xf32>
    %9 = vector.broadcast %8 : vector<1x32xf32> to vector<8x32xf32>
    %10 = arith.mulf %7, %9 : vector<8x32xf32>
    %cst_7 = arith.constant dense<0.000000e+00> : vector<8xf32>
    %11 = vector.multi_reduction <add>, %10, %cst_7 [1] : vector<8x32xf32> to vector<8xf32>
    %12 = vector.shape_cast %11 : vector<8xf32> to vector<8x1xf32>
    %c2 = arith.constant 2 : index
    %c0_8 = arith.constant 0 : index
    %13 = vector.load %arg5[%c2, %c0_8] : memref<8x32xf32, #tpu.memory_space<vmem>>, vector<1x1xf32>
    %14 = vector.broadcast %13 : vector<1x1xf32> to vector<8x1xf32>
    %15 = arith.addf %12, %14 : vector<8x1xf32>
    %cst_9 = arith.constant 2.000000e+01 : f32
    %16 = vector.broadcast %cst_9 : f32 to vector<8x1xf32>
    %17 = arith.cmpf ogt, %15, %16 : vector<8x1xf32>
    %cst_10 = arith.constant 2.000000e+01 : f32
    %18 = vector.broadcast %cst_10 : f32 to vector<8x1xf32>
    %19 = arith.minimumf %15, %18 : vector<8x1xf32>
    %20 = math.exp %19 : vector<8x1xf32>
    %21 = math.log1p %20 : vector<8x1xf32>
    %22 = arith.select %17, %15, %21 : vector<8x1xi1>, vector<8x1xf32>
    %c0_11 = arith.constant 0 : index
    %c0_12 = arith.constant 0 : index
    %23 = vector.load %arg2[%c0_11, %c0_12] : memref<32x32xf32, #tpu.memory_space<vmem>>, vector<32x32xf32>
    %cst_13 = arith.constant dense<0.000000e+00> : vector<8x32xf32>
    %24 = tpu.matmul %0, %23, %cst_13 {dimension_numbers = #tpu.dot_dimension_numbers<[1], [0], [0], [1], [0, 0, 1, 1], [], []>} : vector<8x32xf32>, vector<32x32xf32>, vector<8x32xf32> -> vector<8x32xf32>
    %cst_14 = arith.constant 0.000000e+00 : f32
    %25 = vector.broadcast %cst_14 : f32 to vector<8x128xf32>
    %c0_15 = arith.constant 0 : index
    %c0_16 = arith.constant 0 : index
    %26 = vector.load %arg4[%c0_15, %c0_16] : memref<72x128xf32, #tpu.memory_space<vmem>>, vector<1x128xf32>
    %c32 = arith.constant 32 : index
    %c0_17 = arith.constant 0 : index
    %27 = vector.load %arg4[%c32, %c0_17] : memref<72x128xf32, #tpu.memory_space<vmem>>, vector<1x128xf32>
    %28 = vector.extract_strided_slice %24 {offsets = [0, 0], sizes = [8, 1], strides = [1, 1]} : vector<8x32xf32> to vector<8x1xf32>
    %29 = vector.broadcast %28 : vector<8x1xf32> to vector<8x128xf32>
    %30 = vector.broadcast %26 : vector<1x128xf32> to vector<8x128xf32>
    %31 = arith.addf %29, %30 : vector<8x128xf32>
    %cst_18 = arith.constant 0.000000e+00 : f32
    %32 = vector.broadcast %cst_18 : f32 to vector<8x128xf32>
    %33 = arith.maximumf %31, %32 : vector<8x128xf32>
    %34 = vector.broadcast %27 : vector<1x128xf32> to vector<8x128xf32>
    %35 = arith.mulf %33, %34 : vector<8x128xf32>
    %36 = arith.addf %25, %35 : vector<8x128xf32>
    %c1_19 = arith.constant 1 : index
    %c0_20 = arith.constant 0 : index
    %37 = vector.load %arg4[%c1_19, %c0_20] : memref<72x128xf32, #tpu.memory_space<vmem>>, vector<1x128xf32>
    %c33 = arith.constant 33 : index
    %c0_21 = arith.constant 0 : index
    %38 = vector.load %arg4[%c33, %c0_21] : memref<72x128xf32, #tpu.memory_space<vmem>>, vector<1x128xf32>
    %39 = vector.extract_strided_slice %24 {offsets = [0, 1], sizes = [8, 1], strides = [1, 1]} : vector<8x32xf32> to vector<8x1xf32>
    %40 = vector.broadcast %39 : vector<8x1xf32> to vector<8x128xf32>
    %41 = vector.broadcast %37 : vector<1x128xf32> to vector<8x128xf32>
    %42 = arith.addf %40, %41 : vector<8x128xf32>
    %cst_22 = arith.constant 0.000000e+00 : f32
    %43 = vector.broadcast %cst_22 : f32 to vector<8x128xf32>
    %44 = arith.maximumf %42, %43 : vector<8x128xf32>
    %45 = vector.broadcast %38 : vector<1x128xf32> to vector<8x128xf32>
    %46 = arith.mulf %44, %45 : vector<8x128xf32>
    %47 = arith.addf %36, %46 : vector<8x128xf32>
    %c2_23 = arith.constant 2 : index
    %c0_24 = arith.constant 0 : index
    %48 = vector.load %arg4[%c2_23, %c0_24] : memref<72x128xf32, #tpu.memory_space<vmem>>, vector<1x128xf32>
    %c34 = arith.constant 34 : index
    %c0_25 = arith.constant 0 : index
    %49 = vector.load %arg4[%c34, %c0_25] : memref<72x128xf32, #tpu.memory_space<vmem>>, vector<1x128xf32>
    %50 = vector.extract_strided_slice %24 {offsets = [0, 2], sizes = [8, 1], strides = [1, 1]} : vector<8x32xf32> to vector<8x1xf32>
    %51 = vector.broadcast %50 : vector<8x1xf32> to vector<8x128xf32>
    %52 = vector.broadcast %48 : vector<1x128xf32> to vector<8x128xf32>
    %53 = arith.addf %51, %52 : vector<8x128xf32>
    %cst_26 = arith.constant 0.000000e+00 : f32
    %54 = vector.broadcast %cst_26 : f32 to vector<8x128xf32>
    %55 = arith.maximumf %53, %54 : vector<8x128xf32>
    %56 = vector.broadcast %49 : vector<1x128xf32> to vector<8x128xf32>
    %57 = arith.mulf %55, %56 : vector<8x128xf32>
    %58 = arith.addf %47, %57 : vector<8x128xf32>
    %c3 = arith.constant 3 : index
    %c0_27 = arith.constant 0 : index
    %59 = vector.load %arg4[%c3, %c0_27] : memref<72x128xf32, #tpu.memory_space<vmem>>, vector<1x128xf32>
    %c35 = arith.constant 35 : index
    %c0_28 = arith.constant 0 : index
    %60 = vector.load %arg4[%c35, %c0_28] : memref<72x128xf32, #tpu.memory_space<vmem>>, vector<1x128xf32>
    %61 = vector.extract_strided_slice %24 {offsets = [0, 3], sizes = [8, 1], strides = [1, 1]} : vector<8x32xf32> to vector<8x1xf32>
    %62 = vector.broadcast %61 : vector<8x1xf32> to vector<8x128xf32>
    %63 = vector.broadcast %59 : vector<1x128xf32> to vector<8x128xf32>
    %64 = arith.addf %62, %63 : vector<8x128xf32>
    %cst_29 = arith.constant 0.000000e+00 : f32
    %65 = vector.broadcast %cst_29 : f32 to vector<8x128xf32>
    %66 = arith.maximumf %64, %65 : vector<8x128xf32>
    %67 = vector.broadcast %60 : vector<1x128xf32> to vector<8x128xf32>
    %68 = arith.mulf %66, %67 : vector<8x128xf32>
    %69 = arith.addf %58, %68 : vector<8x128xf32>
    %c4 = arith.constant 4 : index
    %c0_30 = arith.constant 0 : index
    %70 = vector.load %arg4[%c4, %c0_30] : memref<72x128xf32, #tpu.memory_space<vmem>>, vector<1x128xf32>
    %c36 = arith.constant 36 : index
    %c0_31 = arith.constant 0 : index
    %71 = vector.load %arg4[%c36, %c0_31] : memref<72x128xf32, #tpu.memory_space<vmem>>, vector<1x128xf32>
    %72 = vector.extract_strided_slice %24 {offsets = [0, 4], sizes = [8, 1], strides = [1, 1]} : vector<8x32xf32> to vector<8x1xf32>
    %73 = vector.broadcast %72 : vector<8x1xf32> to vector<8x128xf32>
    %74 = vector.broadcast %70 : vector<1x128xf32> to vector<8x128xf32>
    %75 = arith.addf %73, %74 : vector<8x128xf32>
    %cst_32 = arith.constant 0.000000e+00 : f32
    %76 = vector.broadcast %cst_32 : f32 to vector<8x128xf32>
    %77 = arith.maximumf %75, %76 : vector<8x128xf32>
    %78 = vector.broadcast %71 : vector<1x128xf32> to vector<8x128xf32>
    %79 = arith.mulf %77, %78 : vector<8x128xf32>
    %80 = arith.addf %69, %79 : vector<8x128xf32>
    %c5 = arith.constant 5 : index
    %c0_33 = arith.constant 0 : index
    %81 = vector.load %arg4[%c5, %c0_33] : memref<72x128xf32, #tpu.memory_space<vmem>>, vector<1x128xf32>
    %c37 = arith.constant 37 : index
    %c0_34 = arith.constant 0 : index
    %82 = vector.load %arg4[%c37, %c0_34] : memref<72x128xf32, #tpu.memory_space<vmem>>, vector<1x128xf32>
    %83 = vector.extract_strided_slice %24 {offsets = [0, 5], sizes = [8, 1], strides = [1, 1]} : vector<8x32xf32> to vector<8x1xf32>
    %84 = vector.broadcast %83 : vector<8x1xf32> to vector<8x128xf32>
    %85 = vector.broadcast %81 : vector<1x128xf32> to vector<8x128xf32>
    %86 = arith.addf %84, %85 : vector<8x128xf32>
    %cst_35 = arith.constant 0.000000e+00 : f32
    %87 = vector.broadcast %cst_35 : f32 to vector<8x128xf32>
    %88 = arith.maximumf %86, %87 : vector<8x128xf32>
    %89 = vector.broadcast %82 : vector<1x128xf32> to vector<8x128xf32>
    %90 = arith.mulf %88, %89 : vector<8x128xf32>
    %91 = arith.addf %80, %90 : vector<8x128xf32>
    %c6 = arith.constant 6 : index
    %c0_36 = arith.constant 0 : index
    %92 = vector.load %arg4[%c6, %c0_36] : memref<72x128xf32, #tpu.memory_space<vmem>>, vector<1x128xf32>
    %c38 = arith.constant 38 : index
    %c0_37 = arith.constant 0 : index
    %93 = vector.load %arg4[%c38, %c0_37] : memref<72x128xf32, #tpu.memory_space<vmem>>, vector<1x128xf32>
    %94 = vector.extract_strided_slice %24 {offsets = [0, 6], sizes = [8, 1], strides = [1, 1]} : vector<8x32xf32> to vector<8x1xf32>
    %95 = vector.broadcast %94 : vector<8x1xf32> to vector<8x128xf32>
    %96 = vector.broadcast %92 : vector<1x128xf32> to vector<8x128xf32>
    %97 = arith.addf %95, %96 : vector<8x128xf32>
    %cst_38 = arith.constant 0.000000e+00 : f32
    %98 = vector.broadcast %cst_38 : f32 to vector<8x128xf32>
    %99 = arith.maximumf %97, %98 : vector<8x128xf32>
    %100 = vector.broadcast %93 : vector<1x128xf32> to vector<8x128xf32>
    %101 = arith.mulf %99, %100 : vector<8x128xf32>
    %102 = arith.addf %91, %101 : vector<8x128xf32>
    %c7 = arith.constant 7 : index
    %c0_39 = arith.constant 0 : index
    %103 = vector.load %arg4[%c7, %c0_39] : memref<72x128xf32, #tpu.memory_space<vmem>>, vector<1x128xf32>
    %c39 = arith.constant 39 : index
    %c0_40 = arith.constant 0 : index
    %104 = vector.load %arg4[%c39, %c0_40] : memref<72x128xf32, #tpu.memory_space<vmem>>, vector<1x128xf32>
    %105 = vector.extract_strided_slice %24 {offsets = [0, 7], sizes = [8, 1], strides = [1, 1]} : vector<8x32xf32> to vector<8x1xf32>
    %106 = vector.broadcast %105 : vector<8x1xf32> to vector<8x128xf32>
    %107 = vector.broadcast %103 : vector<1x128xf32> to vector<8x128xf32>
    %108 = arith.addf %106, %107 : vector<8x128xf32>
    %cst_41 = arith.constant 0.000000e+00 : f32
    %109 = vector.broadcast %cst_41 : f32 to vector<8x128xf32>
    %110 = arith.maximumf %108, %109 : vector<8x128xf32>
    %111 = vector.broadcast %104 : vector<1x128xf32> to vector<8x128xf32>
    %112 = arith.mulf %110, %111 : vector<8x128xf32>
    %113 = arith.addf %102, %112 : vector<8x128xf32>
    %c8 = arith.constant 8 : index
    %c0_42 = arith.constant 0 : index
    %114 = vector.load %arg4[%c8, %c0_42] : memref<72x128xf32, #tpu.memory_space<vmem>>, vector<1x128xf32>
    %c40 = arith.constant 40 : index
    %c0_43 = arith.constant 0 : index
    %115 = vector.load %arg4[%c40, %c0_43] : memref<72x128xf32, #tpu.memory_space<vmem>>, vector<1x128xf32>
    %116 = vector.extract_strided_slice %24 {offsets = [0, 8], sizes = [8, 1], strides = [1, 1]} : vector<8x32xf32> to vector<8x1xf32>
    %117 = vector.broadcast %116 : vector<8x1xf32> to vector<8x128xf32>
    %118 = vector.broadcast %114 : vector<1x128xf32> to vector<8x128xf32>
    %119 = arith.addf %117, %118 : vector<8x128xf32>
    %cst_44 = arith.constant 0.000000e+00 : f32
    %120 = vector.broadcast %cst_44 : f32 to vector<8x128xf32>
    %121 = arith.maximumf %119, %120 : vector<8x128xf32>
    %122 = vector.broadcast %115 : vector<1x128xf32> to vector<8x128xf32>
    %123 = arith.mulf %121, %122 : vector<8x128xf32>
    %124 = arith.addf %113, %123 : vector<8x128xf32>
    %c9 = arith.constant 9 : index
    %c0_45 = arith.constant 0 : index
    %125 = vector.load %arg4[%c9, %c0_45] : memref<72x128xf32, #tpu.memory_space<vmem>>, vector<1x128xf32>
    %c41 = arith.constant 41 : index
    %c0_46 = arith.constant 0 : index
    %126 = vector.load %arg4[%c41, %c0_46] : memref<72x128xf32, #tpu.memory_space<vmem>>, vector<1x128xf32>
    %127 = vector.extract_strided_slice %24 {offsets = [0, 9], sizes = [8, 1], strides = [1, 1]} : vector<8x32xf32> to vector<8x1xf32>
    %128 = vector.broadcast %127 : vector<8x1xf32> to vector<8x128xf32>
    %129 = vector.broadcast %125 : vector<1x128xf32> to vector<8x128xf32>
    %130 = arith.addf %128, %129 : vector<8x128xf32>
    %cst_47 = arith.constant 0.000000e+00 : f32
    %131 = vector.broadcast %cst_47 : f32 to vector<8x128xf32>
    %132 = arith.maximumf %130, %131 : vector<8x128xf32>
    %133 = vector.broadcast %126 : vector<1x128xf32> to vector<8x128xf32>
    %134 = arith.mulf %132, %133 : vector<8x128xf32>
    %135 = arith.addf %124, %134 : vector<8x128xf32>
    %c10 = arith.constant 10 : index
    %c0_48 = arith.constant 0 : index
    %136 = vector.load %arg4[%c10, %c0_48] : memref<72x128xf32, #tpu.memory_space<vmem>>, vector<1x128xf32>
    %c42 = arith.constant 42 : index
    %c0_49 = arith.constant 0 : index
    %137 = vector.load %arg4[%c42, %c0_49] : memref<72x128xf32, #tpu.memory_space<vmem>>, vector<1x128xf32>
    %138 = vector.extract_strided_slice %24 {offsets = [0, 10], sizes = [8, 1], strides = [1, 1]} : vector<8x32xf32> to vector<8x1xf32>
    %139 = vector.broadcast %138 : vector<8x1xf32> to vector<8x128xf32>
    %140 = vector.broadcast %136 : vector<1x128xf32> to vector<8x128xf32>
    %141 = arith.addf %139, %140 : vector<8x128xf32>
    %cst_50 = arith.constant 0.000000e+00 : f32
    %142 = vector.broadcast %cst_50 : f32 to vector<8x128xf32>
    %143 = arith.maximumf %141, %142 : vector<8x128xf32>
    %144 = vector.broadcast %137 : vector<1x128xf32> to vector<8x128xf32>
    %145 = arith.mulf %143, %144 : vector<8x128xf32>
    %146 = arith.addf %135, %145 : vector<8x128xf32>
    %c11 = arith.constant 11 : index
    %c0_51 = arith.constant 0 : index
    %147 = vector.load %arg4[%c11, %c0_51] : memref<72x128xf32, #tpu.memory_space<vmem>>, vector<1x128xf32>
    %c43 = arith.constant 43 : index
    %c0_52 = arith.constant 0 : index
    %148 = vector.load %arg4[%c43, %c0_52] : memref<72x128xf32, #tpu.memory_space<vmem>>, vector<1x128xf32>
    %149 = vector.extract_strided_slice %24 {offsets = [0, 11], sizes = [8, 1], strides = [1, 1]} : vector<8x32xf32> to vector<8x1xf32>
    %150 = vector.broadcast %149 : vector<8x1xf32> to vector<8x128xf32>
    %151 = vector.broadcast %147 : vector<1x128xf32> to vector<8x128xf32>
    %152 = arith.addf %150, %151 : vector<8x128xf32>
    %cst_53 = arith.constant 0.000000e+00 : f32
    %153 = vector.broadcast %cst_53 : f32 to vector<8x128xf32>
    %154 = arith.maximumf %152, %153 : vector<8x128xf32>
    %155 = vector.broadcast %148 : vector<1x128xf32> to vector<8x128xf32>
    %156 = arith.mulf %154, %155 : vector<8x128xf32>
    %157 = arith.addf %146, %156 : vector<8x128xf32>
    %c12 = arith.constant 12 : index
    %c0_54 = arith.constant 0 : index
    %158 = vector.load %arg4[%c12, %c0_54] : memref<72x128xf32, #tpu.memory_space<vmem>>, vector<1x128xf32>
    %c44 = arith.constant 44 : index
    %c0_55 = arith.constant 0 : index
    %159 = vector.load %arg4[%c44, %c0_55] : memref<72x128xf32, #tpu.memory_space<vmem>>, vector<1x128xf32>
    %160 = vector.extract_strided_slice %24 {offsets = [0, 12], sizes = [8, 1], strides = [1, 1]} : vector<8x32xf32> to vector<8x1xf32>
    %161 = vector.broadcast %160 : vector<8x1xf32> to vector<8x128xf32>
    %162 = vector.broadcast %158 : vector<1x128xf32> to vector<8x128xf32>
    %163 = arith.addf %161, %162 : vector<8x128xf32>
    %cst_56 = arith.constant 0.000000e+00 : f32
    %164 = vector.broadcast %cst_56 : f32 to vector<8x128xf32>
    %165 = arith.maximumf %163, %164 : vector<8x128xf32>
    %166 = vector.broadcast %159 : vector<1x128xf32> to vector<8x128xf32>
    %167 = arith.mulf %165, %166 : vector<8x128xf32>
    %168 = arith.addf %157, %167 : vector<8x128xf32>
    %c13 = arith.constant 13 : index
    %c0_57 = arith.constant 0 : index
    %169 = vector.load %arg4[%c13, %c0_57] : memref<72x128xf32, #tpu.memory_space<vmem>>, vector<1x128xf32>
    %c45 = arith.constant 45 : index
    %c0_58 = arith.constant 0 : index
    %170 = vector.load %arg4[%c45, %c0_58] : memref<72x128xf32, #tpu.memory_space<vmem>>, vector<1x128xf32>
    %171 = vector.extract_strided_slice %24 {offsets = [0, 13], sizes = [8, 1], strides = [1, 1]} : vector<8x32xf32> to vector<8x1xf32>
    %172 = vector.broadcast %171 : vector<8x1xf32> to vector<8x128xf32>
    %173 = vector.broadcast %169 : vector<1x128xf32> to vector<8x128xf32>
    %174 = arith.addf %172, %173 : vector<8x128xf32>
    %cst_59 = arith.constant 0.000000e+00 : f32
    %175 = vector.broadcast %cst_59 : f32 to vector<8x128xf32>
    %176 = arith.maximumf %174, %175 : vector<8x128xf32>
    %177 = vector.broadcast %170 : vector<1x128xf32> to vector<8x128xf32>
    %178 = arith.mulf %176, %177 : vector<8x128xf32>
    %179 = arith.addf %168, %178 : vector<8x128xf32>
    %c14 = arith.constant 14 : index
    %c0_60 = arith.constant 0 : index
    %180 = vector.load %arg4[%c14, %c0_60] : memref<72x128xf32, #tpu.memory_space<vmem>>, vector<1x128xf32>
    %c46 = arith.constant 46 : index
    %c0_61 = arith.constant 0 : index
    %181 = vector.load %arg4[%c46, %c0_61] : memref<72x128xf32, #tpu.memory_space<vmem>>, vector<1x128xf32>
    %182 = vector.extract_strided_slice %24 {offsets = [0, 14], sizes = [8, 1], strides = [1, 1]} : vector<8x32xf32> to vector<8x1xf32>
    %183 = vector.broadcast %182 : vector<8x1xf32> to vector<8x128xf32>
    %184 = vector.broadcast %180 : vector<1x128xf32> to vector<8x128xf32>
    %185 = arith.addf %183, %184 : vector<8x128xf32>
    %cst_62 = arith.constant 0.000000e+00 : f32
    %186 = vector.broadcast %cst_62 : f32 to vector<8x128xf32>
    %187 = arith.maximumf %185, %186 : vector<8x128xf32>
    %188 = vector.broadcast %181 : vector<1x128xf32> to vector<8x128xf32>
    %189 = arith.mulf %187, %188 : vector<8x128xf32>
    %190 = arith.addf %179, %189 : vector<8x128xf32>
    %c15 = arith.constant 15 : index
    %c0_63 = arith.constant 0 : index
    %191 = vector.load %arg4[%c15, %c0_63] : memref<72x128xf32, #tpu.memory_space<vmem>>, vector<1x128xf32>
    %c47 = arith.constant 47 : index
    %c0_64 = arith.constant 0 : index
    %192 = vector.load %arg4[%c47, %c0_64] : memref<72x128xf32, #tpu.memory_space<vmem>>, vector<1x128xf32>
    %193 = vector.extract_strided_slice %24 {offsets = [0, 15], sizes = [8, 1], strides = [1, 1]} : vector<8x32xf32> to vector<8x1xf32>
    %194 = vector.broadcast %193 : vector<8x1xf32> to vector<8x128xf32>
    %195 = vector.broadcast %191 : vector<1x128xf32> to vector<8x128xf32>
    %196 = arith.addf %194, %195 : vector<8x128xf32>
    %cst_65 = arith.constant 0.000000e+00 : f32
    %197 = vector.broadcast %cst_65 : f32 to vector<8x128xf32>
    %198 = arith.maximumf %196, %197 : vector<8x128xf32>
    %199 = vector.broadcast %192 : vector<1x128xf32> to vector<8x128xf32>
    %200 = arith.mulf %198, %199 : vector<8x128xf32>
    %201 = arith.addf %190, %200 : vector<8x128xf32>
    %c16 = arith.constant 16 : index
    %c0_66 = arith.constant 0 : index
    %202 = vector.load %arg4[%c16, %c0_66] : memref<72x128xf32, #tpu.memory_space<vmem>>, vector<1x128xf32>
    %c48 = arith.constant 48 : index
    %c0_67 = arith.constant 0 : index
    %203 = vector.load %arg4[%c48, %c0_67] : memref<72x128xf32, #tpu.memory_space<vmem>>, vector<1x128xf32>
    %204 = vector.extract_strided_slice %24 {offsets = [0, 16], sizes = [8, 1], strides = [1, 1]} : vector<8x32xf32> to vector<8x1xf32>
    %205 = vector.broadcast %204 : vector<8x1xf32> to vector<8x128xf32>
    %206 = vector.broadcast %202 : vector<1x128xf32> to vector<8x128xf32>
    %207 = arith.addf %205, %206 : vector<8x128xf32>
    %cst_68 = arith.constant 0.000000e+00 : f32
    %208 = vector.broadcast %cst_68 : f32 to vector<8x128xf32>
    %209 = arith.maximumf %207, %208 : vector<8x128xf32>
    %210 = vector.broadcast %203 : vector<1x128xf32> to vector<8x128xf32>
    %211 = arith.mulf %209, %210 : vector<8x128xf32>
    %212 = arith.addf %201, %211 : vector<8x128xf32>
    %c17 = arith.constant 17 : index
    %c0_69 = arith.constant 0 : index
    %213 = vector.load %arg4[%c17, %c0_69] : memref<72x128xf32, #tpu.memory_space<vmem>>, vector<1x128xf32>
    %c49 = arith.constant 49 : index
    %c0_70 = arith.constant 0 : index
    %214 = vector.load %arg4[%c49, %c0_70] : memref<72x128xf32, #tpu.memory_space<vmem>>, vector<1x128xf32>
    %215 = vector.extract_strided_slice %24 {offsets = [0, 17], sizes = [8, 1], strides = [1, 1]} : vector<8x32xf32> to vector<8x1xf32>
    %216 = vector.broadcast %215 : vector<8x1xf32> to vector<8x128xf32>
    %217 = vector.broadcast %213 : vector<1x128xf32> to vector<8x128xf32>
    %218 = arith.addf %216, %217 : vector<8x128xf32>
    %cst_71 = arith.constant 0.000000e+00 : f32
    %219 = vector.broadcast %cst_71 : f32 to vector<8x128xf32>
    %220 = arith.maximumf %218, %219 : vector<8x128xf32>
    %221 = vector.broadcast %214 : vector<1x128xf32> to vector<8x128xf32>
    %222 = arith.mulf %220, %221 : vector<8x128xf32>
    %223 = arith.addf %212, %222 : vector<8x128xf32>
    %c18 = arith.constant 18 : index
    %c0_72 = arith.constant 0 : index
    %224 = vector.load %arg4[%c18, %c0_72] : memref<72x128xf32, #tpu.memory_space<vmem>>, vector<1x128xf32>
    %c50 = arith.constant 50 : index
    %c0_73 = arith.constant 0 : index
    %225 = vector.load %arg4[%c50, %c0_73] : memref<72x128xf32, #tpu.memory_space<vmem>>, vector<1x128xf32>
    %226 = vector.extract_strided_slice %24 {offsets = [0, 18], sizes = [8, 1], strides = [1, 1]} : vector<8x32xf32> to vector<8x1xf32>
    %227 = vector.broadcast %226 : vector<8x1xf32> to vector<8x128xf32>
    %228 = vector.broadcast %224 : vector<1x128xf32> to vector<8x128xf32>
    %229 = arith.addf %227, %228 : vector<8x128xf32>
    %cst_74 = arith.constant 0.000000e+00 : f32
    %230 = vector.broadcast %cst_74 : f32 to vector<8x128xf32>
    %231 = arith.maximumf %229, %230 : vector<8x128xf32>
    %232 = vector.broadcast %225 : vector<1x128xf32> to vector<8x128xf32>
    %233 = arith.mulf %231, %232 : vector<8x128xf32>
    %234 = arith.addf %223, %233 : vector<8x128xf32>
    %c19 = arith.constant 19 : index
    %c0_75 = arith.constant 0 : index
    %235 = vector.load %arg4[%c19, %c0_75] : memref<72x128xf32, #tpu.memory_space<vmem>>, vector<1x128xf32>
    %c51 = arith.constant 51 : index
    %c0_76 = arith.constant 0 : index
    %236 = vector.load %arg4[%c51, %c0_76] : memref<72x128xf32, #tpu.memory_space<vmem>>, vector<1x128xf32>
    %237 = vector.extract_strided_slice %24 {offsets = [0, 19], sizes = [8, 1], strides = [1, 1]} : vector<8x32xf32> to vector<8x1xf32>
    %238 = vector.broadcast %237 : vector<8x1xf32> to vector<8x128xf32>
    %239 = vector.broadcast %235 : vector<1x128xf32> to vector<8x128xf32>
    %240 = arith.addf %238, %239 : vector<8x128xf32>
    %cst_77 = arith.constant 0.000000e+00 : f32
    %241 = vector.broadcast %cst_77 : f32 to vector<8x128xf32>
    %242 = arith.maximumf %240, %241 : vector<8x128xf32>
    %243 = vector.broadcast %236 : vector<1x128xf32> to vector<8x128xf32>
    %244 = arith.mulf %242, %243 : vector<8x128xf32>
    %245 = arith.addf %234, %244 : vector<8x128xf32>
    %c20 = arith.constant 20 : index
    %c0_78 = arith.constant 0 : index
    %246 = vector.load %arg4[%c20, %c0_78] : memref<72x128xf32, #tpu.memory_space<vmem>>, vector<1x128xf32>
    %c52 = arith.constant 52 : index
    %c0_79 = arith.constant 0 : index
    %247 = vector.load %arg4[%c52, %c0_79] : memref<72x128xf32, #tpu.memory_space<vmem>>, vector<1x128xf32>
    %248 = vector.extract_strided_slice %24 {offsets = [0, 20], sizes = [8, 1], strides = [1, 1]} : vector<8x32xf32> to vector<8x1xf32>
    %249 = vector.broadcast %248 : vector<8x1xf32> to vector<8x128xf32>
    %250 = vector.broadcast %246 : vector<1x128xf32> to vector<8x128xf32>
    %251 = arith.addf %249, %250 : vector<8x128xf32>
    %cst_80 = arith.constant 0.000000e+00 : f32
    %252 = vector.broadcast %cst_80 : f32 to vector<8x128xf32>
    %253 = arith.maximumf %251, %252 : vector<8x128xf32>
    %254 = vector.broadcast %247 : vector<1x128xf32> to vector<8x128xf32>
    %255 = arith.mulf %253, %254 : vector<8x128xf32>
    %256 = arith.addf %245, %255 : vector<8x128xf32>
    %c21 = arith.constant 21 : index
    %c0_81 = arith.constant 0 : index
    %257 = vector.load %arg4[%c21, %c0_81] : memref<72x128xf32, #tpu.memory_space<vmem>>, vector<1x128xf32>
    %c53 = arith.constant 53 : index
    %c0_82 = arith.constant 0 : index
    %258 = vector.load %arg4[%c53, %c0_82] : memref<72x128xf32, #tpu.memory_space<vmem>>, vector<1x128xf32>
    %259 = vector.extract_strided_slice %24 {offsets = [0, 21], sizes = [8, 1], strides = [1, 1]} : vector<8x32xf32> to vector<8x1xf32>
    %260 = vector.broadcast %259 : vector<8x1xf32> to vector<8x128xf32>
    %261 = vector.broadcast %257 : vector<1x128xf32> to vector<8x128xf32>
    %262 = arith.addf %260, %261 : vector<8x128xf32>
    %cst_83 = arith.constant 0.000000e+00 : f32
    %263 = vector.broadcast %cst_83 : f32 to vector<8x128xf32>
    %264 = arith.maximumf %262, %263 : vector<8x128xf32>
    %265 = vector.broadcast %258 : vector<1x128xf32> to vector<8x128xf32>
    %266 = arith.mulf %264, %265 : vector<8x128xf32>
    %267 = arith.addf %256, %266 : vector<8x128xf32>
    %c22 = arith.constant 22 : index
    %c0_84 = arith.constant 0 : index
    %268 = vector.load %arg4[%c22, %c0_84] : memref<72x128xf32, #tpu.memory_space<vmem>>, vector<1x128xf32>
    %c54 = arith.constant 54 : index
    %c0_85 = arith.constant 0 : index
    %269 = vector.load %arg4[%c54, %c0_85] : memref<72x128xf32, #tpu.memory_space<vmem>>, vector<1x128xf32>
    %270 = vector.extract_strided_slice %24 {offsets = [0, 22], sizes = [8, 1], strides = [1, 1]} : vector<8x32xf32> to vector<8x1xf32>
    %271 = vector.broadcast %270 : vector<8x1xf32> to vector<8x128xf32>
    %272 = vector.broadcast %268 : vector<1x128xf32> to vector<8x128xf32>
    %273 = arith.addf %271, %272 : vector<8x128xf32>
    %cst_86 = arith.constant 0.000000e+00 : f32
    %274 = vector.broadcast %cst_86 : f32 to vector<8x128xf32>
    %275 = arith.maximumf %273, %274 : vector<8x128xf32>
    %276 = vector.broadcast %269 : vector<1x128xf32> to vector<8x128xf32>
    %277 = arith.mulf %275, %276 : vector<8x128xf32>
    %278 = arith.addf %267, %277 : vector<8x128xf32>
    %c23 = arith.constant 23 : index
    %c0_87 = arith.constant 0 : index
    %279 = vector.load %arg4[%c23, %c0_87] : memref<72x128xf32, #tpu.memory_space<vmem>>, vector<1x128xf32>
    %c55 = arith.constant 55 : index
    %c0_88 = arith.constant 0 : index
    %280 = vector.load %arg4[%c55, %c0_88] : memref<72x128xf32, #tpu.memory_space<vmem>>, vector<1x128xf32>
    %281 = vector.extract_strided_slice %24 {offsets = [0, 23], sizes = [8, 1], strides = [1, 1]} : vector<8x32xf32> to vector<8x1xf32>
    %282 = vector.broadcast %281 : vector<8x1xf32> to vector<8x128xf32>
    %283 = vector.broadcast %279 : vector<1x128xf32> to vector<8x128xf32>
    %284 = arith.addf %282, %283 : vector<8x128xf32>
    %cst_89 = arith.constant 0.000000e+00 : f32
    %285 = vector.broadcast %cst_89 : f32 to vector<8x128xf32>
    %286 = arith.maximumf %284, %285 : vector<8x128xf32>
    %287 = vector.broadcast %280 : vector<1x128xf32> to vector<8x128xf32>
    %288 = arith.mulf %286, %287 : vector<8x128xf32>
    %289 = arith.addf %278, %288 : vector<8x128xf32>
    %c24 = arith.constant 24 : index
    %c0_90 = arith.constant 0 : index
    %290 = vector.load %arg4[%c24, %c0_90] : memref<72x128xf32, #tpu.memory_space<vmem>>, vector<1x128xf32>
    %c56 = arith.constant 56 : index
    %c0_91 = arith.constant 0 : index
    %291 = vector.load %arg4[%c56, %c0_91] : memref<72x128xf32, #tpu.memory_space<vmem>>, vector<1x128xf32>
    %292 = vector.extract_strided_slice %24 {offsets = [0, 24], sizes = [8, 1], strides = [1, 1]} : vector<8x32xf32> to vector<8x1xf32>
    %293 = vector.broadcast %292 : vector<8x1xf32> to vector<8x128xf32>
    %294 = vector.broadcast %290 : vector<1x128xf32> to vector<8x128xf32>
    %295 = arith.addf %293, %294 : vector<8x128xf32>
    %cst_92 = arith.constant 0.000000e+00 : f32
    %296 = vector.broadcast %cst_92 : f32 to vector<8x128xf32>
    %297 = arith.maximumf %295, %296 : vector<8x128xf32>
    %298 = vector.broadcast %291 : vector<1x128xf32> to vector<8x128xf32>
    %299 = arith.mulf %297, %298 : vector<8x128xf32>
    %300 = arith.addf %289, %299 : vector<8x128xf32>
    %c25 = arith.constant 25 : index
    %c0_93 = arith.constant 0 : index
    %301 = vector.load %arg4[%c25, %c0_93] : memref<72x128xf32, #tpu.memory_space<vmem>>, vector<1x128xf32>
    %c57 = arith.constant 57 : index
    %c0_94 = arith.constant 0 : index
    %302 = vector.load %arg4[%c57, %c0_94] : memref<72x128xf32, #tpu.memory_space<vmem>>, vector<1x128xf32>
    %303 = vector.extract_strided_slice %24 {offsets = [0, 25], sizes = [8, 1], strides = [1, 1]} : vector<8x32xf32> to vector<8x1xf32>
    %304 = vector.broadcast %303 : vector<8x1xf32> to vector<8x128xf32>
    %305 = vector.broadcast %301 : vector<1x128xf32> to vector<8x128xf32>
    %306 = arith.addf %304, %305 : vector<8x128xf32>
    %cst_95 = arith.constant 0.000000e+00 : f32
    %307 = vector.broadcast %cst_95 : f32 to vector<8x128xf32>
    %308 = arith.maximumf %306, %307 : vector<8x128xf32>
    %309 = vector.broadcast %302 : vector<1x128xf32> to vector<8x128xf32>
    %310 = arith.mulf %308, %309 : vector<8x128xf32>
    %311 = arith.addf %300, %310 : vector<8x128xf32>
    %c26 = arith.constant 26 : index
    %c0_96 = arith.constant 0 : index
    %312 = vector.load %arg4[%c26, %c0_96] : memref<72x128xf32, #tpu.memory_space<vmem>>, vector<1x128xf32>
    %c58 = arith.constant 58 : index
    %c0_97 = arith.constant 0 : index
    %313 = vector.load %arg4[%c58, %c0_97] : memref<72x128xf32, #tpu.memory_space<vmem>>, vector<1x128xf32>
    %314 = vector.extract_strided_slice %24 {offsets = [0, 26], sizes = [8, 1], strides = [1, 1]} : vector<8x32xf32> to vector<8x1xf32>
    %315 = vector.broadcast %314 : vector<8x1xf32> to vector<8x128xf32>
    %316 = vector.broadcast %312 : vector<1x128xf32> to vector<8x128xf32>
    %317 = arith.addf %315, %316 : vector<8x128xf32>
    %cst_98 = arith.constant 0.000000e+00 : f32
    %318 = vector.broadcast %cst_98 : f32 to vector<8x128xf32>
    %319 = arith.maximumf %317, %318 : vector<8x128xf32>
    %320 = vector.broadcast %313 : vector<1x128xf32> to vector<8x128xf32>
    %321 = arith.mulf %319, %320 : vector<8x128xf32>
    %322 = arith.addf %311, %321 : vector<8x128xf32>
    %c27 = arith.constant 27 : index
    %c0_99 = arith.constant 0 : index
    %323 = vector.load %arg4[%c27, %c0_99] : memref<72x128xf32, #tpu.memory_space<vmem>>, vector<1x128xf32>
    %c59 = arith.constant 59 : index
    %c0_100 = arith.constant 0 : index
    %324 = vector.load %arg4[%c59, %c0_100] : memref<72x128xf32, #tpu.memory_space<vmem>>, vector<1x128xf32>
    %325 = vector.extract_strided_slice %24 {offsets = [0, 27], sizes = [8, 1], strides = [1, 1]} : vector<8x32xf32> to vector<8x1xf32>
    %326 = vector.broadcast %325 : vector<8x1xf32> to vector<8x128xf32>
    %327 = vector.broadcast %323 : vector<1x128xf32> to vector<8x128xf32>
    %328 = arith.addf %326, %327 : vector<8x128xf32>
    %cst_101 = arith.constant 0.000000e+00 : f32
    %329 = vector.broadcast %cst_101 : f32 to vector<8x128xf32>
    %330 = arith.maximumf %328, %329 : vector<8x128xf32>
    %331 = vector.broadcast %324 : vector<1x128xf32> to vector<8x128xf32>
    %332 = arith.mulf %330, %331 : vector<8x128xf32>
    %333 = arith.addf %322, %332 : vector<8x128xf32>
    %c28 = arith.constant 28 : index
    %c0_102 = arith.constant 0 : index
    %334 = vector.load %arg4[%c28, %c0_102] : memref<72x128xf32, #tpu.memory_space<vmem>>, vector<1x128xf32>
    %c60 = arith.constant 60 : index
    %c0_103 = arith.constant 0 : index
    %335 = vector.load %arg4[%c60, %c0_103] : memref<72x128xf32, #tpu.memory_space<vmem>>, vector<1x128xf32>
    %336 = vector.extract_strided_slice %24 {offsets = [0, 28], sizes = [8, 1], strides = [1, 1]} : vector<8x32xf32> to vector<8x1xf32>
    %337 = vector.broadcast %336 : vector<8x1xf32> to vector<8x128xf32>
    %338 = vector.broadcast %334 : vector<1x128xf32> to vector<8x128xf32>
    %339 = arith.addf %337, %338 : vector<8x128xf32>
    %cst_104 = arith.constant 0.000000e+00 : f32
    %340 = vector.broadcast %cst_104 : f32 to vector<8x128xf32>
    %341 = arith.maximumf %339, %340 : vector<8x128xf32>
    %342 = vector.broadcast %335 : vector<1x128xf32> to vector<8x128xf32>
    %343 = arith.mulf %341, %342 : vector<8x128xf32>
    %344 = arith.addf %333, %343 : vector<8x128xf32>
    %c29 = arith.constant 29 : index
    %c0_105 = arith.constant 0 : index
    %345 = vector.load %arg4[%c29, %c0_105] : memref<72x128xf32, #tpu.memory_space<vmem>>, vector<1x128xf32>
    %c61 = arith.constant 61 : index
    %c0_106 = arith.constant 0 : index
    %346 = vector.load %arg4[%c61, %c0_106] : memref<72x128xf32, #tpu.memory_space<vmem>>, vector<1x128xf32>
    %347 = vector.extract_strided_slice %24 {offsets = [0, 29], sizes = [8, 1], strides = [1, 1]} : vector<8x32xf32> to vector<8x1xf32>
    %348 = vector.broadcast %347 : vector<8x1xf32> to vector<8x128xf32>
    %349 = vector.broadcast %345 : vector<1x128xf32> to vector<8x128xf32>
    %350 = arith.addf %348, %349 : vector<8x128xf32>
    %cst_107 = arith.constant 0.000000e+00 : f32
    %351 = vector.broadcast %cst_107 : f32 to vector<8x128xf32>
    %352 = arith.maximumf %350, %351 : vector<8x128xf32>
    %353 = vector.broadcast %346 : vector<1x128xf32> to vector<8x128xf32>
    %354 = arith.mulf %352, %353 : vector<8x128xf32>
    %355 = arith.addf %344, %354 : vector<8x128xf32>
    %c30 = arith.constant 30 : index
    %c0_108 = arith.constant 0 : index
    %356 = vector.load %arg4[%c30, %c0_108] : memref<72x128xf32, #tpu.memory_space<vmem>>, vector<1x128xf32>
    %c62 = arith.constant 62 : index
    %c0_109 = arith.constant 0 : index
    %357 = vector.load %arg4[%c62, %c0_109] : memref<72x128xf32, #tpu.memory_space<vmem>>, vector<1x128xf32>
    %358 = vector.extract_strided_slice %24 {offsets = [0, 30], sizes = [8, 1], strides = [1, 1]} : vector<8x32xf32> to vector<8x1xf32>
    %359 = vector.broadcast %358 : vector<8x1xf32> to vector<8x128xf32>
    %360 = vector.broadcast %356 : vector<1x128xf32> to vector<8x128xf32>
    %361 = arith.addf %359, %360 : vector<8x128xf32>
    %cst_110 = arith.constant 0.000000e+00 : f32
    %362 = vector.broadcast %cst_110 : f32 to vector<8x128xf32>
    %363 = arith.maximumf %361, %362 : vector<8x128xf32>
    %364 = vector.broadcast %357 : vector<1x128xf32> to vector<8x128xf32>
    %365 = arith.mulf %363, %364 : vector<8x128xf32>
    %366 = arith.addf %355, %365 : vector<8x128xf32>
    %c31 = arith.constant 31 : index
    %c0_111 = arith.constant 0 : index
    %367 = vector.load %arg4[%c31, %c0_111] : memref<72x128xf32, #tpu.memory_space<vmem>>, vector<1x128xf32>
    %c63 = arith.constant 63 : index
    %c0_112 = arith.constant 0 : index
    %368 = vector.load %arg4[%c63, %c0_112] : memref<72x128xf32, #tpu.memory_space<vmem>>, vector<1x128xf32>
    %369 = vector.extract_strided_slice %24 {offsets = [0, 31], sizes = [8, 1], strides = [1, 1]} : vector<8x32xf32> to vector<8x1xf32>
    %370 = vector.broadcast %369 : vector<8x1xf32> to vector<8x128xf32>
    %371 = vector.broadcast %367 : vector<1x128xf32> to vector<8x128xf32>
    %372 = arith.addf %370, %371 : vector<8x128xf32>
    %cst_113 = arith.constant 0.000000e+00 : f32
    %373 = vector.broadcast %cst_113 : f32 to vector<8x128xf32>
    %374 = arith.maximumf %372, %373 : vector<8x128xf32>
    %375 = vector.broadcast %368 : vector<1x128xf32> to vector<8x128xf32>
    %376 = arith.mulf %374, %375 : vector<8x128xf32>
    %377 = arith.addf %366, %376 : vector<8x128xf32>
    %c64 = arith.constant 64 : index
    %c0_114 = arith.constant 0 : index
    %378 = vector.load %arg4[%c64, %c0_114] : memref<72x128xf32, #tpu.memory_space<vmem>>, vector<1x128xf32>
    %379 = vector.broadcast %378 : vector<1x128xf32> to vector<8x128xf32>
    %380 = arith.addf %377, %379 : vector<8x128xf32>
    %381 = vector.broadcast %22 : vector<8x1xf32> to vector<8x128xf32>
    %382 = arith.mulf %380, %381 : vector<8x128xf32>
    %c0_115 = arith.constant 0 : index
    %c0_116 = arith.constant 0 : index
    %383 = vector.load %arg6[%c0_115, %c0_116] : memref<8x128xf32, #tpu.memory_space<vmem>>, vector<8x128xf32>
    tpu.vector_store %arg6[%c0_115, %c0_116], %382 {strides = array<i32>} : memref<8x128xf32, #tpu.memory_space<vmem>>, vector<8x128xf32>,
    return
  }
  func.func @transform_0(%arg0: i32) -> (i32, i32) {
    %c0_i32 = arith.constant 0 : i32
    %c0_i32_0 = arith.constant 0 : i32
    return %arg0, %c0_i32 : i32, i32
  }
  func.func @transform_1(%arg0: i32) -> (i32, i32) {
    %c0_i32 = arith.constant 0 : i32
    %c0_i32_0 = arith.constant 0 : i32
    %c0_i32_1 = arith.constant 0 : i32
    return %c0_i32, %c0_i32_0 : i32, i32
  }
  func.func @transform_2(%arg0: i32) -> (i32, i32) {
    %c0_i32 = arith.constant 0 : i32
    %c0_i32_0 = arith.constant 0 : i32
    %c0_i32_1 = arith.constant 0 : i32
    return %c0_i32, %c0_i32_0 : i32, i32
  }
  func.func @transform_3(%arg0: i32) -> (i32, i32) {
    %c0_i32 = arith.constant 0 : i32
    %c0_i32_0 = arith.constant 0 : i32
    %c0_i32_1 = arith.constant 0 : i32
    return %c0_i32, %c0_i32_0 : i32, i32
  }
  func.func @transform_4(%arg0: i32) -> (i32, i32) {
    %c0_i32 = arith.constant 0 : i32
    %c0_i32_0 = arith.constant 0 : i32
    %c0_i32_1 = arith.constant 0 : i32
    return %c0_i32, %c0_i32_0 : i32, i32
  }
  func.func @transform_5(%arg0: i32) -> (i32, i32) {
    %c0_i32 = arith.constant 0 : i32
    %c0_i32_0 = arith.constant 0 : i32
    return %arg0, %c0_i32 : i32, i32
  }
}

</mosaic_0001>

<llo_original>
// kernel: tpu_custom_call.1
$region0: #{tpu_custom_call.1}
  #allocation0 [shape = 'u32[]', space=smem, size = 0x4, offset = 0x4, fixed_abs, tag = 'smem constant byte address 0x4 - core index']
  #allocation1 [shape = 'u32[144,128]{1,0:T(1,128)}', space=vmem, size = 0x12000, scoped, tag = 'internal scratch']
  %s0 = inlined_call_operand.hbm [shape: f32[8,32], index: 0, kind: input, shape index: {}]
  %s1 = inlined_call_operand.hbm [shape: f32[32,32], index: 1, kind: input, shape index: {}]
  %s2 = inlined_call_operand.hbm [shape: f32[32,32], index: 2, kind: input, shape index: {}]
  %s3 = inlined_call_operand.hbm [shape: f32[72,128], index: 3, kind: input, shape index: {}]
  %s4 = inlined_call_operand.vmem [shape: f32[8,32], index: 4, kind: input, shape index: {}]
  %s5 = inlined_call_operand.hbm [shape: f32[8,128], index: 5, kind: output, shape index: {}]
  %s6 = sld [smem:[#allocation0]]
  $region46: #{tpu_custom_call.1} parent=0
    _
  %s8 = ssub.s32 1, %s6
  %s9 = scalar_select 0, %s8, %s6
  $region1: #{tpu_custom_call.1} parent=0
    #allocation2 [shape = 'u8[4096]{0}', space=vmem, size = 0x1000, scoped, tag = 'input window, operand 0, single buffered']
    #allocation3 [shape = 's32[1]{0}', space=sflag, size = 0x4, scoped, tag = 'scoped memory for tpu_custom_call.1']
    #allocation4 [shape = 's32[1]{0}', space=sflag, size = 0x4, scoped, tag = 'scoped memory for tpu_custom_call.1']
    #allocation5 [shape = 'u8[16384]{0}', space=vmem, size = 0x4000, scoped, tag = 'input window, operand 1, single buffered']
    #allocation6 [shape = 's32[1]{0}', space=sflag, size = 0x4, scoped, tag = 'scoped memory for tpu_custom_call.1']
    #allocation7 [shape = 'u8[16384]{0}', space=vmem, size = 0x4000, scoped, tag = 'input window, operand 2, single buffered']
    #allocation8 [shape = 'u8[36864]{0}', space=vmem, size = 0x9000, scoped, tag = 'input window, operand 3, single buffered']
    #allocation9 [shape = 's32[1]{0}', space=sflag, size = 0x4, scoped, tag = 'scoped memory for tpu_custom_call.1']
    #allocation10 [shape = 'u8[4096]{0}', space=vmem, size = 0x1000, scoped, tag = 'output window, operand 0, single buffered']
    %10 = vsyncpa [#allocation3], 0
    %11 = vsyncpa [#allocation6], 0
    %12 = vsyncpa [#allocation9], 0
    %13 = vsyncpa [#allocation4], 0
    // Predicated region
    $region2: #{tpu_custom_call.1} parent=1 // pred_check
      _
    $region3: #{tpu_custom_call.1} parent=1 // pred_check_branch
      %15 = sbr.rel (0) target = $region5
    $region4: #{tpu_custom_call.1} parent=1 // pred_region
      %s17 = ssub.s32 128, 128
      %18 = vsyncadd [#allocation3], %s17
      %s20 = sshll.u32 [#allocation2], 4
      %s21 = int_to_ptr.vmem [resolvable:$true] %s20
      %23 = dma.hbm_to_vmem [thread:$0]  %s0, 128, %s21, [#allocation3]
    $region5: #{tpu_custom_call.1} parent=1 // pred_fallthru
      _
    // Predicated region
    $region6: #{tpu_custom_call.1} parent=1 // pred_check
      _
    $region7: #{tpu_custom_call.1} parent=1 // pred_check_branch
      %25 = sbr.rel (0) target = $region9
    $region8: #{tpu_custom_call.1} parent=1 // pred_region
      %s27 = ssub.s32 512, 512
      %28 = vsyncadd [#allocation6], %s27
      %s29 = sshll.u32 [#allocation5], 4
      %s30 = int_to_ptr.vmem [resolvable:$true] %s29
      %35 = dma.hbm_to_vmem [thread:$0]  %s1, 512, %s30, [#allocation6], 128, 128, 8
    $region9: #{tpu_custom_call.1} parent=1 // pred_fallthru
      _
    // Predicated region
    $region10: #{tpu_custom_call.1} parent=1 // pred_check
      _
    $region11: #{tpu_custom_call.1} parent=1 // pred_check_branch
      %37 = sbr.rel (0) target = $region13
    $region12: #{tpu_custom_call.1} parent=1 // pred_region
      %s39 = ssub.s32 512, 512
      %40 = vsyncadd [#allocation6], %s39
      %s41 = sshll.u32 [#allocation7], 4
      %s42 = int_to_ptr.vmem [resolvable:$true] %s41
      %47 = dma.hbm_to_vmem [thread:$0]  %s2, 512, %s42, [#allocation6], 128, 128, 8
    $region13: #{tpu_custom_call.1} parent=1 // pred_fallthru
      _
    // Predicated region
    $region14: #{tpu_custom_call.1} parent=1 // pred_check
      _
    $region15: #{tpu_custom_call.1} parent=1 // pred_check_branch
      %49 = sbr.rel (0) target = $region17
    $region16: #{tpu_custom_call.1} parent=1 // pred_region
      %s51 = ssub.s32 1152, 1152
      %52 = vsyncadd [#allocation9], %s51
      %s53 = sshll.u32 [#allocation8], 4
      %s54 = int_to_ptr.vmem [resolvable:$true] %s53
      %59 = dma.hbm_to_vmem [thread:$0]  %s3, 1152, %s54, [#allocation9], 128, 128, 8
    $region17: #{tpu_custom_call.1} parent=1 // pred_fallthru
      _
    // Predicated region
    $region18: #{tpu_custom_call.1} parent=1 // pred_check
      _
    $region19: #{tpu_custom_call.1} parent=1 // pred_check_branch
      %61 = sbr.rel (0) target = $region21
    $region20: #{tpu_custom_call.1} parent=1 // pred_region
      _
    $region21: #{tpu_custom_call.1} parent=1 // pred_fallthru
      _
    // Predicated region
    $region22: #{tpu_custom_call.1} parent=1 // pred_check
      _
    $region23: #{tpu_custom_call.1} parent=1 // pred_check_branch
      %63 = sbr.rel (0) target = $region25
    $region24: #{tpu_custom_call.1} parent=1 // pred_region
      %64 = dma.done [#allocation3], 128
    $region25: #{tpu_custom_call.1} parent=1 // pred_fallthru
      _
    // Predicated region
    $region26: #{tpu_custom_call.1} parent=1 // pred_check
      _
    $region27: #{tpu_custom_call.1} parent=1 // pred_check_branch
      %66 = sbr.rel (0) target = $region29
    $region28: #{tpu_custom_call.1} parent=1 // pred_region
      %67 = dma.done [#allocation6], 512
    $region29: #{tpu_custom_call.1} parent=1 // pred_fallthru
      _
    // Predicated region
    $region30: #{tpu_custom_call.1} parent=1 // pred_check
      _
    $region31: #{tpu_custom_call.1} parent=1 // pred_check_branch
      %69 = sbr.rel (0) target = $region33
    $region32: #{tpu_custom_call.1} parent=1 // pred_region
      %70 = dma.done [#allocation6], 512
    $region33: #{tpu_custom_call.1} parent=1 // pred_fallthru
      _
    // Predicated region
    $region34: #{tpu_custom_call.1} parent=1 // pred_check
      _
    $region35: #{tpu_custom_call.1} parent=1 // pred_check_branch
      %72 = sbr.rel (0) target = $region37
    $region36: #{tpu_custom_call.1} parent=1 // pred_region
      %73 = dma.done [#allocation9], 1152
    $region37: #{tpu_custom_call.1} parent=1 // pred_fallthru
      _
    %v74 = vld [vmem:[#allocation2] sm:$0xff]
    %v75 = vld [vmem:[#allocation7] sm:$0xff]
    %v76 = vld [vmem:[#allocation7 + $0x8] sm:$0xff]
    %v77 = vld [vmem:[#allocation7 + $0x10] sm:$0xff]
    %v78 = vld [vmem:[#allocation7 + $0x18] sm:$0xff]
    %v79 = vld [vmem:[%s4] sm:$0x1]
    %v80 = vlaneseq
    %v81 = vshrl.u32 %v80, 7
    %v82 = vsub.s32 0, %v81
    %v83 = vrot.slane %v79, %v82
    %vm84 = vcmask 261120
    %v86 = vsel %vm84, %v74, 0
    %88 = vmatprep.subr.mxu0 0.0
    %89 = vmatpush1.msra.mxu0 %v75
    %90 = vmatprep.subr.mxu0 0.0
    %91 = vmatpush1.msra.mxu0 %v76
    %92 = vmatprep.subr.mxu0 0.0
    %93 = vmatpush1.msra.mxu0 %v77
    %94 = vmatprep.subr.mxu0 0.0
    %95 = vmatpush1.msra.mxu0 %v78
    %96 = vmatprep.subr.mxu0 0.0
    %97 = vmatpush1.msra.mxu0 0.0
    %98 = vmatprep.subr.mxu0 0.0
    %99 = vmatpush1.msra.mxu0 0.0
    %100 = vmatprep.subr.mxu0 0.0
    %101 = vmatpush1.msra.mxu0 0.0
    %102 = vmatprep.subr.mxu0 0.0
    %103 = vmatpush1.msra.mxu0 0.0
    %104 = vmatprep.subr.mxu0 0.0
    %105 = vmatpush1.msra.mxu0 0.0
    %106 = vmatprep.subr.mxu0 0.0
    %107 = vmatpush1.msra.mxu0 0.0
    %108 = vmatprep.subr.mxu0 0.0
    %109 = vmatpush1.msra.mxu0 0.0
    %110 = vmatprep.subr.mxu0 0.0
    %111 = vmatpush1.msra.mxu0 0.0
    %112 = vmatprep.subr.mxu0 0.0
    %113 = vmatpush1.msra.mxu0 0.0
    %114 = vmatprep.subr.mxu0 0.0
    %115 = vmatpush1.msra.mxu0 0.0
    %116 = vmatprep.subr.mxu0 0.0
    %117 = vmatpush1.msra.mxu0 0.0
    %118 = vmatprep.subr.mxu0 0.0
    %119 = vmatpush1.msra.mxu0 0.0
    %120 = vmatprep.subr.mxu0 0.0
    %121 = vmatpush1.msra.mxu0 0.0
    %122 = vmatprep.subr.mxu0 0.0
    %123 = vmatpush1.msra.mxu0 0.0
    %124 = vmatprep.subr.mxu0 0.0
    %125 = vmatpush1.msra.mxu0 0.0
    %126 = vmatprep.subr.mxu0 0.0
    %127 = vmatpush1.msra.mxu0 0.0
    %128 = vmatprep.subr.mxu0 0.0
    %129 = vmatpush1.msra.mxu0 0.0
    %130 = vmatprep.subr.mxu0 0.0
    %131 = vmatpush1.msra.mxu0 0.0
    %132 = vmatprep.subr.mxu0 0.0
    %133 = vmatpush1.msra.mxu0 0.0
    %134 = vmatprep.subr.mxu0 0.0
    %135 = vmatpush1.msra.mxu0 0.0
    %136 = vmatprep.subr.mxu0 0.0
    %137 = vmatpush1.msra.mxu0 0.0
    %138 = vmatprep.subr.mxu0 0.0
    %139 = vmatpush1.msra.mxu0 0.0
    %140 = vmatprep.subr.mxu0 0.0
    %141 = vmatpush1.msra.mxu0 0.0
    %142 = vmatprep.subr.mxu0 0.0
    %143 = vmatpush1.msra.mxu0 0.0
    %144 = vmatprep.subr.mxu0 0.0
    %145 = vmatpush1.msra.mxu0 0.0
    %146 = vmatprep.subr.mxu0 0.0
    %147 = vmatpush1.msra.mxu0 0.0
    %148 = vmatprep.subr.mxu0 0.0
    %149 = vmatpush1.msra.mxu0 0.0
    %150 = vmatprep.subr.mxu0 0.0
    %151 = vmatpush1.msra.mxu0 0.0
    %152 = vmatprep.mubr.f32.mxu0 0.0
    %153 = vmatmul.mubr.f32.gmra.mrb[0].mxu0 %v86
    %v154 = vpop.f32.mrb[0].mxu0
    %v155 = vadd.f32 %v83, %v154
    %v156 = vpop.f32.mrb[0].mxu0
    %157 = vdwg.mxu0
    %v158 = vmax.f32 %v155, 0.0
    %v159 = vld [vmem:[%s4 + $0x1] sm:$0x1]
    %v160 = vlaneseq
    %v161 = vshrl.u32 %v160, 7
    %v162 = vsub.s32 0, %v161
    %v163 = vrot.slane %v159, %v162
    %v164 = vmul.f32 %v158, %v163
    %v165 = vsel %vm84, %v164, 0.0
    %166 = vadd.xlane.f32.xlu0 %v165
    %v167 = vpop.xlane.xlu0 %166
    %v168 = vld [vmem:[%s4 + $0x2] sm:$0x1]
    %v169 = vlaneseq
    %v170 = vshrl.u32 %v169, 7
    %v171 = vsub.s32 0, %v170
    %v172 = vrot.slane %v168, %v171
    %v173 = vadd.f32 %v167, %v172
    %vm174 = vcmp.gt.f32.partialorder %v173, 20.0
    %v175 = vmin.f32 %v173, 20.0
    %v176 = vmul.f32 %v175, 1.442695
    %v177 = vpow.pop %v176
    %v178 = vadd.f32 %v177, 1.0
    %v179 = vlog2.pop %v178
    %v180 = vmul.f32 %v179, 0.6931472
    %v181 = vmul.f32 -0.5, %v177
    %v182 = vadd.f32 %v181, 1.0
    %v183 = vmul.f32 %v182, %v177
    %v184 = vand.u32 2147483647, %v177
    %vm185 = vcmp.lt.f32.partialorder %v184, 0.0004427343
    %v186 = vsel %vm185, %v183, %v180
    %v187 = vsel %vm174, %v173, %v186
    %v188 = vld [vmem:[#allocation5] sm:$0xff]
    %v189 = vld [vmem:[#allocation5 + $0x8] sm:$0xff]
    %v190 = vld [vmem:[#allocation5 + $0x10] sm:$0xff]
    %v191 = vld [vmem:[#allocation5 + $0x18] sm:$0xff]
    %192 = vmatprep.subr.mxu0 0.0
    %193 = vmatpush1.msra.mxu0 %v188
    %194 = vmatprep.subr.mxu0 0.0
    %195 = vmatpush1.msra.mxu0 %v189
    %196 = vmatprep.subr.mxu0 0.0
    %197 = vmatpush1.msra.mxu0 %v190
    %198 = vmatprep.subr.mxu0 0.0
    %199 = vmatpush1.msra.mxu0 %v191
    %200 = vmatprep.subr.mxu0 0.0
    %201 = vmatpush1.msra.mxu0 0.0
    %202 = vmatprep.subr.mxu0 0.0
    %203 = vmatpush1.msra.mxu0 0.0
    %204 = vmatprep.subr.mxu0 0.0
    %205 = vmatpush1.msra.mxu0 0.0
    %206 = vmatprep.subr.mxu0 0.0
    %207 = vmatpush1.msra.mxu0 0.0
    %208 = vmatprep.subr.mxu0 0.0
    %209 = vmatpush1.msra.mxu0 0.0
    %210 = vmatprep.subr.mxu0 0.0
    %211 = vmatpush1.msra.mxu0 0.0
    %212 = vmatprep.subr.mxu0 0.0
    %213 = vmatpush1.msra.mxu0 0.0
    %214 = vmatprep.subr.mxu0 0.0
    %215 = vmatpush1.msra.mxu0 0.0
    %216 = vmatprep.subr.mxu0 0.0
    %217 = vmatpush1.msra.mxu0 0.0
    %218 = vmatprep.subr.mxu0 0.0
    %219 = vmatpush1.msra.mxu0 0.0
    %220 = vmatprep.subr.mxu0 0.0
    %221 = vmatpush1.msra.mxu0 0.0
    %222 = vmatprep.subr.mxu0 0.0
    %223 = vmatpush1.msra.mxu0 0.0
    %224 = vmatprep.subr.mxu0 0.0
    %225 = vmatpush1.msra.mxu0 0.0
    %226 = vmatprep.subr.mxu0 0.0
    %227 = vmatpush1.msra.mxu0 0.0
    %228 = vmatprep.subr.mxu0 0.0
    %229 = vmatpush1.msra.mxu0 0.0
    %230 = vmatprep.subr.mxu0 0.0
    %231 = vmatpush1.msra.mxu0 0.0
    %232 = vmatprep.subr.mxu0 0.0
    %233 = vmatpush1.msra.mxu0 0.0
    %234 = vmatprep.subr.mxu0 0.0
    %235 = vmatpush1.msra.mxu0 0.0
    %236 = vmatprep.subr.mxu0 0.0
    %237 = vmatpush1.msra.mxu0 0.0
    %238 = vmatprep.subr.mxu0 0.0
    %239 = vmatpush1.msra.mxu0 0.0
    %240 = vmatprep.subr.mxu0 0.0
    %241 = vmatpush1.msra.mxu0 0.0
    %242 = vmatprep.subr.mxu0 0.0
    %243 = vmatpush1.msra.mxu0 0.0
    %244 = vmatprep.subr.mxu0 0.0
    %245 = vmatpush1.msra.mxu0 0.0
    %246 = vmatprep.subr.mxu0 0.0
    %247 = vmatpush1.msra.mxu0 0.0
    %248 = vmatprep.subr.mxu0 0.0
    %249 = vmatpush1.msra.mxu0 0.0
    %250 = vmatprep.subr.mxu0 0.0
    %251 = vmatpush1.msra.mxu0 0.0
    %252 = vmatprep.subr.mxu0 0.0
    %253 = vmatpush1.msra.mxu0 0.0
    %254 = vmatprep.subr.mxu0 0.0
    %255 = vmatpush1.msra.mxu0 0.0
    %256 = vmatprep.mubr.f32.mxu0 0.0
    %257 = vmatmul.mubr.f32.gmra.mrb[0].mxu0 %v86
    %v258 = vpop.f32.mrb[0].mxu0
    %v259 = vadd.f32 0.0, %v258
    %v260 = vpop.f32.mrb[0].mxu0
    %261 = vdwg.mxu0
    %v262 = vld [vmem:[#allocation8] sm:$0x1]
    %v263 = vld [vmem:[#allocation8 + $0x20] sm:$0x1]
    %265 = vset.pattern.permute.xlu0 0
    %266 = vperm.xlu0 %265, %v259
    %v267 = vpop.permute.xlu0 %266
    %v269 = vlaneseq
    %v270 = vshrl.u32 %v269, 7
    %v271 = vsub.s32 0, %v270
    %v272 = vrot.slane %v262, %v271
    %v273 = vadd.f32 %v267, %v272
    %v274 = vmax.f32 %v273, 0.0
    %v275 = vlaneseq
    %v276 = vshrl.u32 %v275, 7
    %v277 = vsub.s32 0, %v276
    %v278 = vrot.slane %v263, %v277
    %v279 = vmul.f32 %v274, %v278
    %v280 = vadd.f32 %v279, 0.0
    %v281 = vld [vmem:[#allocation8 + $0x1] sm:$0x1]
    %v282 = vld [vmem:[#allocation8 + $0x21] sm:$0x1]
    %283 = vset.pattern.permute.xlu0 1
    %284 = vperm.xlu0 %283, %v259
    %v285 = vpop.permute.xlu0 %284
    %v287 = vlaneseq
    %v288 = vshrl.u32 %v287, 7
    %v289 = vsub.s32 0, %v288
    %v290 = vrot.slane %v281, %v289
    %v291 = vadd.f32 %v285, %v290
    %v292 = vmax.f32 %v291, 0.0
    %v293 = vlaneseq
    %v294 = vshrl.u32 %v293, 7
    %v295 = vsub.s32 0, %v294
    %v296 = vrot.slane %v282, %v295
    %v297 = vmul.f32 %v292, %v296
    %v298 = vadd.f32 %v280, %v297
    %v299 = vld [vmem:[#allocation8 + $0x2] sm:$0x1]
    %v300 = vld [vmem:[#allocation8 + $0x22] sm:$0x1]
    %301 = vset.pattern.permute.xlu0 2
    %302 = vperm.xlu0 %301, %v259
    %v303 = vpop.permute.xlu0 %302
    %v305 = vlaneseq
    %v306 = vshrl.u32 %v305, 7
    %v307 = vsub.s32 0, %v306
    %v308 = vrot.slane %v299, %v307
    %v309 = vadd.f32 %v303, %v308
    %v310 = vmax.f32 %v309, 0.0
    %v311 = vlaneseq
    %v312 = vshrl.u32 %v311, 7
    %v313 = vsub.s32 0, %v312
    %v314 = vrot.slane %v300, %v313
    %v315 = vmul.f32 %v310, %v314
    %v316 = vadd.f32 %v298, %v315
    %v317 = vld [vmem:[#allocation8 + $0x3] sm:$0x1]
    %v318 = vld [vmem:[#allocation8 + $0x23] sm:$0x1]
    %319 = vset.pattern.permute.xlu0 3
    %320 = vperm.xlu0 %319, %v259
    %v321 = vpop.permute.xlu0 %320
    %v323 = vlaneseq
    %v324 = vshrl.u32 %v323, 7
    %v325 = vsub.s32 0, %v324
    %v326 = vrot.slane %v317, %v325
    %v327 = vadd.f32 %v321, %v326
    %v328 = vmax.f32 %v327, 0.0
    %v329 = vlaneseq
    %v330 = vshrl.u32 %v329, 7
    %v331 = vsub.s32 0, %v330
    %v332 = vrot.slane %v318, %v331
    %v333 = vmul.f32 %v328, %v332
    %v334 = vadd.f32 %v316, %v333
    %v335 = vld [vmem:[#allocation8 + $0x4] sm:$0x1]
    %v336 = vld [vmem:[#allocation8 + $0x24] sm:$0x1]
    %337 = vset.pattern.permute.xlu0 4
    %338 = vperm.xlu0 %337, %v259
    %v339 = vpop.permute.xlu0 %338
    %v341 = vlaneseq
    %v342 = vshrl.u32 %v341, 7
    %v343 = vsub.s32 0, %v342
    %v344 = vrot.slane %v335, %v343
    %v345 = vadd.f32 %v339, %v344
    %v346 = vmax.f32 %v345, 0.0
    %v347 = vlaneseq
    %v348 = vshrl.u32 %v347, 7
    %v349 = vsub.s32 0, %v348
    %v350 = vrot.slane %v336, %v349
    %v351 = vmul.f32 %v346, %v350
    %v352 = vadd.f32 %v334, %v351
    %v353 = vld [vmem:[#allocation8 + $0x5] sm:$0x1]
    %v354 = vld [vmem:[#allocation8 + $0x25] sm:$0x1]
    %355 = vset.pattern.permute.xlu0 5
    %356 = vperm.xlu0 %355, %v259
    %v357 = vpop.permute.xlu0 %356
    %v359 = vlaneseq
    %v360 = vshrl.u32 %v359, 7
    %v361 = vsub.s32 0, %v360
    %v362 = vrot.slane %v353, %v361
    %v363 = vadd.f32 %v357, %v362
    %v364 = vmax.f32 %v363, 0.0
    %v365 = vlaneseq
    %v366 = vshrl.u32 %v365, 7
    %v367 = vsub.s32 0, %v366
    %v368 = vrot.slane %v354, %v367
    %v369 = vmul.f32 %v364, %v368
    %v370 = vadd.f32 %v352, %v369
    %v371 = vld [vmem:[#allocation8 + $0x6] sm:$0x1]
    %v372 = vld [vmem:[#allocation8 + $0x26] sm:$0x1]
    %373 = vset.pattern.permute.xlu0 6
    %374 = vperm.xlu0 %373, %v259
    %v375 = vpop.permute.xlu0 %374
    %v377 = vlaneseq
    %v378 = vshrl.u32 %v377, 7
    %v379 = vsub.s32 0, %v378
    %v380 = vrot.slane %v371, %v379
    %v381 = vadd.f32 %v375, %v380
    %v382 = vmax.f32 %v381, 0.0
    %v383 = vlaneseq
    %v384 = vshrl.u32 %v383, 7
    %v385 = vsub.s32 0, %v384
    %v386 = vrot.slane %v372, %v385
    %v387 = vmul.f32 %v382, %v386
    %v388 = vadd.f32 %v370, %v387
    %v389 = vld [vmem:[#allocation8 + $0x7] sm:$0x1]
    %v390 = vld [vmem:[#allocation8 + $0x27] sm:$0x1]
    %391 = vset.pattern.permute.xlu0 7
    %392 = vperm.xlu0 %391, %v259
    %v393 = vpop.permute.xlu0 %392
    %v395 = vlaneseq
    %v396 = vshrl.u32 %v395, 7
    %v397 = vsub.s32 0, %v396
    %v398 = vrot.slane %v389, %v397
    %v399 = vadd.f32 %v393, %v398
    %v400 = vmax.f32 %v399, 0.0
    %v401 = vlaneseq
    %v402 = vshrl.u32 %v401, 7
    %v403 = vsub.s32 0, %v402
    %v404 = vrot.slane %v390, %v403
    %v405 = vmul.f32 %v400, %v404
    %v406 = vadd.f32 %v388, %v405
    %v407 = vld [vmem:[#allocation8 + $0x8] sm:$0x1]
    %v408 = vld [vmem:[#allocation8 + $0x28] sm:$0x1]
    %409 = vset.pattern.permute.xlu0 8
    %410 = vperm.xlu0 %409, %v259
    %v411 = vpop.permute.xlu0 %410
    %v413 = vlaneseq
    %v414 = vshrl.u32 %v413, 7
    %v415 = vsub.s32 0, %v414
    %v416 = vrot.slane %v407, %v415
    %v417 = vadd.f32 %v411, %v416
    %v418 = vmax.f32 %v417, 0.0
    %v419 = vlaneseq
    %v420 = vshrl.u32 %v419, 7
    %v421 = vsub.s32 0, %v420
    %v422 = vrot.slane %v408, %v421
    %v423 = vmul.f32 %v418, %v422
    %v424 = vadd.f32 %v406, %v423
    %v425 = vld [vmem:[#allocation8 + $0x9] sm:$0x1]
    %v426 = vld [vmem:[#allocation8 + $0x29] sm:$0x1]
    %427 = vset.pattern.permute.xlu0 9
    %428 = vperm.xlu0 %427, %v259
    %v429 = vpop.permute.xlu0 %428
    %v431 = vlaneseq
    %v432 = vshrl.u32 %v431, 7
    %v433 = vsub.s32 0, %v432
    %v434 = vrot.slane %v425, %v433
    %v435 = vadd.f32 %v429, %v434
    %v436 = vmax.f32 %v435, 0.0
    %v437 = vlaneseq
    %v438 = vshrl.u32 %v437, 7
    %v439 = vsub.s32 0, %v438
    %v440 = vrot.slane %v426, %v439
    %v441 = vmul.f32 %v436, %v440
    %v442 = vadd.f32 %v424, %v441
    %v443 = vld [vmem:[#allocation8 + $0xa] sm:$0x1]
    %v444 = vld [vmem:[#allocation8 + $0x2a] sm:$0x1]
    %445 = vset.pattern.permute.xlu0 10
    %446 = vperm.xlu0 %445, %v259
    %v447 = vpop.permute.xlu0 %446
    %v449 = vlaneseq
    %v450 = vshrl.u32 %v449, 7
    %v451 = vsub.s32 0, %v450
    %v452 = vrot.slane %v443, %v451
    %v453 = vadd.f32 %v447, %v452
    %v454 = vmax.f32 %v453, 0.0
    %v455 = vlaneseq
    %v456 = vshrl.u32 %v455, 7
    %v457 = vsub.s32 0, %v456
    %v458 = vrot.slane %v444, %v457
    %v459 = vmul.f32 %v454, %v458
    %v460 = vadd.f32 %v442, %v459
    %v461 = vld [vmem:[#allocation8 + $0xb] sm:$0x1]
    %v462 = vld [vmem:[#allocation8 + $0x2b] sm:$0x1]
    %463 = vset.pattern.permute.xlu0 11
    %464 = vperm.xlu0 %463, %v259
    %v465 = vpop.permute.xlu0 %464
    %v467 = vlaneseq
    %v468 = vshrl.u32 %v467, 7
    %v469 = vsub.s32 0, %v468
    %v470 = vrot.slane %v461, %v469
    %v471 = vadd.f32 %v465, %v470
    %v472 = vmax.f32 %v471, 0.0
    %v473 = vlaneseq
    %v474 = vshrl.u32 %v473, 7
    %v475 = vsub.s32 0, %v474
    %v476 = vrot.slane %v462, %v475
    %v477 = vmul.f32 %v472, %v476
    %v478 = vadd.f32 %v460, %v477
    %v479 = vld [vmem:[#allocation8 + $0xc] sm:$0x1]
    %v480 = vld [vmem:[#allocation8 + $0x2c] sm:$0x1]
    %481 = vset.pattern.permute.xlu0 12
    %482 = vperm.xlu0 %481, %v259
    %v483 = vpop.permute.xlu0 %482
    %v485 = vlaneseq
    %v486 = vshrl.u32 %v485, 7
    %v487 = vsub.s32 0, %v486
    %v488 = vrot.slane %v479, %v487
    %v489 = vadd.f32 %v483, %v488
    %v490 = vmax.f32 %v489, 0.0
    %v491 = vlaneseq
    %v492 = vshrl.u32 %v491, 7
    %v493 = vsub.s32 0, %v492
    %v494 = vrot.slane %v480, %v493
    %v495 = vmul.f32 %v490, %v494
    %v496 = vadd.f32 %v478, %v495
    %v497 = vld [vmem:[#allocation8 + $0xd] sm:$0x1]
    %v498 = vld [vmem:[#allocation8 + $0x2d] sm:$0x1]
    %499 = vset.pattern.permute.xlu0 13
    %500 = vperm.xlu0 %499, %v259
    %v501 = vpop.permute.xlu0 %500
    %v503 = vlaneseq
    %v504 = vshrl.u32 %v503, 7
    %v505 = vsub.s32 0, %v504
    %v506 = vrot.slane %v497, %v505
    %v507 = vadd.f32 %v501, %v506
    %v508 = vmax.f32 %v507, 0.0
    %v509 = vlaneseq
    %v510 = vshrl.u32 %v509, 7
    %v511 = vsub.s32 0, %v510
    %v512 = vrot.slane %v498, %v511
    %v513 = vmul.f32 %v508, %v512
    %v514 = vadd.f32 %v496, %v513
    %v515 = vld [vmem:[#allocation8 + $0xe] sm:$0x1]
    %v516 = vld [vmem:[#allocation8 + $0x2e] sm:$0x1]
    %517 = vset.pattern.permute.xlu0 14
    %518 = vperm.xlu0 %517, %v259
    %v519 = vpop.permute.xlu0 %518
    %v521 = vlaneseq
    %v522 = vshrl.u32 %v521, 7
    %v523 = vsub.s32 0, %v522
    %v524 = vrot.slane %v515, %v523
    %v525 = vadd.f32 %v519, %v524
    %v526 = vmax.f32 %v525, 0.0
    %v527 = vlaneseq
    %v528 = vshrl.u32 %v527, 7
    %v529 = vsub.s32 0, %v528
    %v530 = vrot.slane %v516, %v529
    %v531 = vmul.f32 %v526, %v530
    %v532 = vadd.f32 %v514, %v531
    %v533 = vld [vmem:[#allocation8 + $0xf] sm:$0x1]
    %v534 = vld [vmem:[#allocation8 + $0x2f] sm:$0x1]
    %535 = vset.pattern.permute.xlu0 15
    %536 = vperm.xlu0 %535, %v259
    %v537 = vpop.permute.xlu0 %536
    %v539 = vlaneseq
    %v540 = vshrl.u32 %v539, 7
    %v541 = vsub.s32 0, %v540
    %v542 = vrot.slane %v533, %v541
    %v543 = vadd.f32 %v537, %v542
    %v544 = vmax.f32 %v543, 0.0
    %v545 = vlaneseq
    %v546 = vshrl.u32 %v545, 7
    %v547 = vsub.s32 0, %v546
    %v548 = vrot.slane %v534, %v547
    %v549 = vmul.f32 %v544, %v548
    %v550 = vadd.f32 %v532, %v549
    %v551 = vld [vmem:[#allocation8 + $0x10] sm:$0x1]
    %v552 = vld [vmem:[#allocation8 + $0x30] sm:$0x1]
    %553 = vset.pattern.permute.xlu0 16
    %554 = vperm.xlu0 %553, %v259
    %v555 = vpop.permute.xlu0 %554
    %v557 = vlaneseq
    %v558 = vshrl.u32 %v557, 7
    %v559 = vsub.s32 0, %v558
    %v560 = vrot.slane %v551, %v559
    %v561 = vadd.f32 %v555, %v560
    %v562 = vmax.f32 %v561, 0.0
    %v563 = vlaneseq
    %v564 = vshrl.u32 %v563, 7
    %v565 = vsub.s32 0, %v564
    %v566 = vrot.slane %v552, %v565
    %v567 = vmul.f32 %v562, %v566
    %v568 = vadd.f32 %v550, %v567
    %v569 = vld [vmem:[#allocation8 + $0x11] sm:$0x1]
    %v570 = vld [vmem:[#allocation8 + $0x31] sm:$0x1]
    %571 = vset.pattern.permute.xlu0 17
    %572 = vperm.xlu0 %571, %v259
    %v573 = vpop.permute.xlu0 %572
    %v575 = vlaneseq
    %v576 = vshrl.u32 %v575, 7
    %v577 = vsub.s32 0, %v576
    %v578 = vrot.slane %v569, %v577
    %v579 = vadd.f32 %v573, %v578
    %v580 = vmax.f32 %v579, 0.0
    %v581 = vlaneseq
    %v582 = vshrl.u32 %v581, 7
    %v583 = vsub.s32 0, %v582
    %v584 = vrot.slane %v570, %v583
    %v585 = vmul.f32 %v580, %v584
    %v586 = vadd.f32 %v568, %v585
    %v587 = vld [vmem:[#allocation8 + $0x12] sm:$0x1]
    %v588 = vld [vmem:[#allocation8 + $0x32] sm:$0x1]
    %589 = vset.pattern.permute.xlu0 18
    %590 = vperm.xlu0 %589, %v259
    %v591 = vpop.permute.xlu0 %590
    %v593 = vlaneseq
    %v594 = vshrl.u32 %v593, 7
    %v595 = vsub.s32 0, %v594
    %v596 = vrot.slane %v587, %v595
    %v597 = vadd.f32 %v591, %v596
    %v598 = vmax.f32 %v597, 0.0
    %v599 = vlaneseq
    %v600 = vshrl.u32 %v599, 7
    %v601 = vsub.s32 0, %v600
    %v602 = vrot.slane %v588, %v601
    %v603 = vmul.f32 %v598, %v602
    %v604 = vadd.f32 %v586, %v603
    %v605 = vld [vmem:[#allocation8 + $0x13] sm:$0x1]
    %v606 = vld [vmem:[#allocation8 + $0x33] sm:$0x1]
    %607 = vset.pattern.permute.xlu0 19
    %608 = vperm.xlu0 %607, %v259
    %v609 = vpop.permute.xlu0 %608
    %v611 = vlaneseq
    %v612 = vshrl.u32 %v611, 7
    %v613 = vsub.s32 0, %v612
    %v614 = vrot.slane %v605, %v613
    %v615 = vadd.f32 %v609, %v614
    %v616 = vmax.f32 %v615, 0.0
    %v617 = vlaneseq
    %v618 = vshrl.u32 %v617, 7
    %v619 = vsub.s32 0, %v618
    %v620 = vrot.slane %v606, %v619
    %v621 = vmul.f32 %v616, %v620
    %v622 = vadd.f32 %v604, %v621
    %v623 = vld [vmem:[#allocation8 + $0x14] sm:$0x1]
    %v624 = vld [vmem:[#allocation8 + $0x34] sm:$0x1]
    %625 = vset.pattern.permute.xlu0 20
    %626 = vperm.xlu0 %625, %v259
    %v627 = vpop.permute.xlu0 %626
    %v629 = vlaneseq
    %v630 = vshrl.u32 %v629, 7
    %v631 = vsub.s32 0, %v630
    %v632 = vrot.slane %v623, %v631
    %v633 = vadd.f32 %v627, %v632
    %v634 = vmax.f32 %v633, 0.0
    %v635 = vlaneseq
    %v636 = vshrl.u32 %v635, 7
    %v637 = vsub.s32 0, %v636
    %v638 = vrot.slane %v624, %v637
    %v639 = vmul.f32 %v634, %v638
    %v640 = vadd.f32 %v622, %v639
    %v641 = vld [vmem:[#allocation8 + $0x15] sm:$0x1]
    %v642 = vld [vmem:[#allocation8 + $0x35] sm:$0x1]
    %643 = vset.pattern.permute.xlu0 21
    %644 = vperm.xlu0 %643, %v259
    %v645 = vpop.permute.xlu0 %644
    %v647 = vlaneseq
    %v648 = vshrl.u32 %v647, 7
    %v649 = vsub.s32 0, %v648
    %v650 = vrot.slane %v641, %v649
    %v651 = vadd.f32 %v645, %v650
    %v652 = vmax.f32 %v651, 0.0
    %v653 = vlaneseq
    %v654 = vshrl.u32 %v653, 7
    %v655 = vsub.s32 0, %v654
    %v656 = vrot.slane %v642, %v655
    %v657 = vmul.f32 %v652, %v656
    %v658 = vadd.f32 %v640, %v657
    %v659 = vld [vmem:[#allocation8 + $0x16] sm:$0x1]
    %v660 = vld [vmem:[#allocation8 + $0x36] sm:$0x1]
    %661 = vset.pattern.permute.xlu0 22
    %662 = vperm.xlu0 %661, %v259
    %v663 = vpop.permute.xlu0 %662
    %v665 = vlaneseq
    %v666 = vshrl.u32 %v665, 7
    %v667 = vsub.s32 0, %v666
    %v668 = vrot.slane %v659, %v667
    %v669 = vadd.f32 %v663, %v668
    %v670 = vmax.f32 %v669, 0.0
    %v671 = vlaneseq
    %v672 = vshrl.u32 %v671, 7
    %v673 = vsub.s32 0, %v672
    %v674 = vrot.slane %v660, %v673
    %v675 = vmul.f32 %v670, %v674
    %v676 = vadd.f32 %v658, %v675
    %v677 = vld [vmem:[#allocation8 + $0x17] sm:$0x1]
    %v678 = vld [vmem:[#allocation8 + $0x37] sm:$0x1]
    %679 = vset.pattern.permute.xlu0 23
    %680 = vperm.xlu0 %679, %v259
    %v681 = vpop.permute.xlu0 %680
    %v683 = vlaneseq
    %v684 = vshrl.u32 %v683, 7
    %v685 = vsub.s32 0, %v684
    %v686 = vrot.slane %v677, %v685
    %v687 = vadd.f32 %v681, %v686
    %v688 = vmax.f32 %v687, 0.0
    %v689 = vlaneseq
    %v690 = vshrl.u32 %v689, 7
    %v691 = vsub.s32 0, %v690
    %v692 = vrot.slane %v678, %v691
    %v693 = vmul.f32 %v688, %v692
    %v694 = vadd.f32 %v676, %v693
    %v695 = vld [vmem:[#allocation8 + $0x18] sm:$0x1]
    %v696 = vld [vmem:[#allocation8 + $0x38] sm:$0x1]
    %697 = vset.pattern.permute.xlu0 24
    %698 = vperm.xlu0 %697, %v259
    %v699 = vpop.permute.xlu0 %698
    %v701 = vlaneseq
    %v702 = vshrl.u32 %v701, 7
    %v703 = vsub.s32 0, %v702
    %v704 = vrot.slane %v695, %v703
    %v705 = vadd.f32 %v699, %v704
    %v706 = vmax.f32 %v705, 0.0
    %v707 = vlaneseq
    %v708 = vshrl.u32 %v707, 7
    %v709 = vsub.s32 0, %v708
    %v710 = vrot.slane %v696, %v709
    %v711 = vmul.f32 %v706, %v710
    %v712 = vadd.f32 %v694, %v711
    %v713 = vld [vmem:[#allocation8 + $0x19] sm:$0x1]
    %v714 = vld [vmem:[#allocation8 + $0x39] sm:$0x1]
    %715 = vset.pattern.permute.xlu0 25
    %716 = vperm.xlu0 %715, %v259
    %v717 = vpop.permute.xlu0 %716
    %v719 = vlaneseq
    %v720 = vshrl.u32 %v719, 7
    %v721 = vsub.s32 0, %v720
    %v722 = vrot.slane %v713, %v721
    %v723 = vadd.f32 %v717, %v722
    %v724 = vmax.f32 %v723, 0.0
    %v725 = vlaneseq
    %v726 = vshrl.u32 %v725, 7
    %v727 = vsub.s32 0, %v726
    %v728 = vrot.slane %v714, %v727
    %v729 = vmul.f32 %v724, %v728
    %v730 = vadd.f32 %v712, %v729
    %v731 = vld [vmem:[#allocation8 + $0x1a] sm:$0x1]
    %v732 = vld [vmem:[#allocation8 + $0x3a] sm:$0x1]
    %733 = vset.pattern.permute.xlu0 26
    %734 = vperm.xlu0 %733, %v259
    %v735 = vpop.permute.xlu0 %734
    %v737 = vlaneseq
    %v738 = vshrl.u32 %v737, 7
    %v739 = vsub.s32 0, %v738
    %v740 = vrot.slane %v731, %v739
    %v741 = vadd.f32 %v735, %v740
    %v742 = vmax.f32 %v741, 0.0
    %v743 = vlaneseq
    %v744 = vshrl.u32 %v743, 7
    %v745 = vsub.s32 0, %v744
    %v746 = vrot.slane %v732, %v745
    %v747 = vmul.f32 %v742, %v746
    %v748 = vadd.f32 %v730, %v747
    %v749 = vld [vmem:[#allocation8 + $0x1b] sm:$0x1]
    %v750 = vld [vmem:[#allocation8 + $0x3b] sm:$0x1]
    %751 = vset.pattern.permute.xlu0 27
    %752 = vperm.xlu0 %751, %v259
    %v753 = vpop.permute.xlu0 %752
    %v755 = vlaneseq
    %v756 = vshrl.u32 %v755, 7
    %v757 = vsub.s32 0, %v756
    %v758 = vrot.slane %v749, %v757
    %v759 = vadd.f32 %v753, %v758
    %v760 = vmax.f32 %v759, 0.0
    %v761 = vlaneseq
    %v762 = vshrl.u32 %v761, 7
    %v763 = vsub.s32 0, %v762
    %v764 = vrot.slane %v750, %v763
    %v765 = vmul.f32 %v760, %v764
    %v766 = vadd.f32 %v748, %v765
    %v767 = vld [vmem:[#allocation8 + $0x1c] sm:$0x1]
    %v768 = vld [vmem:[#allocation8 + $0x3c] sm:$0x1]
    %769 = vset.pattern.permute.xlu0 28
    %770 = vperm.xlu0 %769, %v259
    %v771 = vpop.permute.xlu0 %770
    %v773 = vlaneseq
    %v774 = vshrl.u32 %v773, 7
    %v775 = vsub.s32 0, %v774
    %v776 = vrot.slane %v767, %v775
    %v777 = vadd.f32 %v771, %v776
    %v778 = vmax.f32 %v777, 0.0
    %v779 = vlaneseq
    %v780 = vshrl.u32 %v779, 7
    %v781 = vsub.s32 0, %v780
    %v782 = vrot.slane %v768, %v781
    %v783 = vmul.f32 %v778, %v782
    %v784 = vadd.f32 %v766, %v783
    %v785 = vld [vmem:[#allocation8 + $0x1d] sm:$0x1]
    %v786 = vld [vmem:[#allocation8 + $0x3d] sm:$0x1]
    %787 = vset.pattern.permute.xlu0 29
    %788 = vperm.xlu0 %787, %v259
    %v789 = vpop.permute.xlu0 %788
    %v791 = vlaneseq
    %v792 = vshrl.u32 %v791, 7
    %v793 = vsub.s32 0, %v792
    %v794 = vrot.slane %v785, %v793
    %v795 = vadd.f32 %v789, %v794
    %v796 = vmax.f32 %v795, 0.0
    %v797 = vlaneseq
    %v798 = vshrl.u32 %v797, 7
    %v799 = vsub.s32 0, %v798
    %v800 = vrot.slane %v786, %v799
    %v801 = vmul.f32 %v796, %v800
    %v802 = vadd.f32 %v784, %v801
    %v803 = vld [vmem:[#allocation8 + $0x1e] sm:$0x1]
    %v804 = vld [vmem:[#allocation8 + $0x3e] sm:$0x1]
    %805 = vset.pattern.permute.xlu0 30
    %806 = vperm.xlu0 %805, %v259
    %v807 = vpop.permute.xlu0 %806
    %v809 = vlaneseq
    %v810 = vshrl.u32 %v809, 7
    %v811 = vsub.s32 0, %v810
    %v812 = vrot.slane %v803, %v811
    %v813 = vadd.f32 %v807, %v812
    %v814 = vmax.f32 %v813, 0.0
    %v815 = vlaneseq
    %v816 = vshrl.u32 %v815, 7
    %v817 = vsub.s32 0, %v816
    %v818 = vrot.slane %v804, %v817
    %v819 = vmul.f32 %v814, %v818
    %v820 = vadd.f32 %v802, %v819
    %v821 = vld [vmem:[#allocation8 + $0x1f] sm:$0x1]
    %v822 = vld [vmem:[#allocation8 + $0x3f] sm:$0x1]
    %823 = vset.pattern.permute.xlu0 31
    %824 = vperm.xlu0 %823, %v259
    %v825 = vpop.permute.xlu0 %824
    %v827 = vlaneseq
    %v828 = vshrl.u32 %v827, 7
    %v829 = vsub.s32 0, %v828
    %v830 = vrot.slane %v821, %v829
    %v831 = vadd.f32 %v825, %v830
    %v832 = vmax.f32 %v831, 0.0
    %v833 = vlaneseq
    %v834 = vshrl.u32 %v833, 7
    %v835 = vsub.s32 0, %v834
    %v836 = vrot.slane %v822, %v835
    %v837 = vmul.f32 %v832, %v836
    %v838 = vadd.f32 %v820, %v837
    %v839 = vld [vmem:[#allocation8 + $0x40] sm:$0x1]
    %v840 = vlaneseq
    %v841 = vshrl.u32 %v840, 7
    %v842 = vsub.s32 0, %v841
    %v843 = vrot.slane %v839, %v842
    %v844 = vadd.f32 %v838, %v843
    %846 = vset.pattern.permute.xlu0 0
    %847 = vperm.xlu0 %846, %v187
    %v848 = vpop.permute.xlu0 %847
    %v850 = vmul.f32 %v844, %v848
    %851 = vst [vmem:[#allocation10] sm:$0xff] %v850
    // Predicated region
    $region38: #{tpu_custom_call.1} parent=1 // pred_check
      _
    $region39: #{tpu_custom_call.1} parent=1 // pred_check_branch
      %853 = sbr.rel (0) target = $region41
    $region40: #{tpu_custom_call.1} parent=1 // pred_region
      %s855 = ssub.s32 128, 128
      %856 = vsyncadd [#allocation4], %s855
      %s858 = sshll.u32 [#allocation10], 4
      %s859 = int_to_ptr.vmem [resolvable:$true] %s858
      %861 = dma.vmem_to_hbm [thread:$0]  %s859, 128, %s5, [#allocation4]
    $region41: #{tpu_custom_call.1} parent=1 // pred_fallthru
      _
    // Predicated region
    $region42: #{tpu_custom_call.1} parent=1 // pred_check
      _
    $region43: #{tpu_custom_call.1} parent=1 // pred_check_branch
      %863 = sbr.rel (0) target = $region45
    $region44: #{tpu_custom_call.1} parent=1 // pred_region
      %864 = dma.done [#allocation4], 128
    $region45: #{tpu_custom_call.1} parent=1 // pred_fallthru
      _
    %865 = vsyncpa [#allocation3], 1
    %866 = vsyncpa [#allocation6], 1
    %867 = vsyncpa [#allocation9], 1
    %868 = vsyncpa [#allocation4], 1

</llo_original>
